<compile_context>
chip_gen: v7x
topology: tpu7x:2x2x1
jax: 0.10.0
libtpu: 0.0.40
codegen_flags: <defaults>
</compile_context>

<pallas_src>
import functools

import jax
import jax.numpy as jnp
from jax.experimental import pallas as pl
from jax.experimental.pallas import tpu as pltpu

BN_EPS = 1e-5


# ----------------------------- Pallas kernels ------------------------------

def _conv1x1_kernel(x_ref, w_ref, b_ref, o_ref, *, relu):
    """(M, Cin) @ (Cin, Cout) with BN-folded bf16 weights, f32 accumulation."""
    a = x_ref[...].astype(jnp.bfloat16)
    out = jnp.dot(a, w_ref[...], preferred_element_type=jnp.float32)
    out = out + b_ref[...]
    if relu:
        out = jnp.maximum(out, 0.0)
    o_ref[...] = out


def _conv3x3_conv1x1_res_kernel(ph_ref, w2_ref, b2_ref, w3_ref, b3_ref, res_ref,
                                o_ref, *, stride, oh, ow, width):
    """Fused conv3x3(stride)+bn2+ReLU -> conv1x1+bn3 -> +identity -> ReLU.

    ph_ref : (s*s, Hp, Wp, width)  phase-decomposed zero-padded conv2 input (f32)
    w2_ref : (9, width, width)     bf16, tap-major (i*3+j), bn2 scale folded
    w3_ref : (width, cout)         bf16, bn3 scale folded
    """
    s = stride
    m = oh * ow
    allp = ph_ref[...]                                   # (s*s, Hp, Wp, width)

    acc = jnp.zeros((m, width), jnp.float32)
    for i in range(3):                                   # static 3x3 tap unroll
        for j in range(3):
            pi = (i % s) * s + (j % s)
            i0 = i // s
            j0 = j // s
            sl = allp[pi, i0:i0 + oh, j0:j0 + ow, :]     # (oh, ow, width) contiguous
            a = sl.reshape(m, width).astype(jnp.bfloat16)
            acc = acc + jnp.dot(a, w2_ref[i * 3 + j],
                                preferred_element_type=jnp.float32)

    h = jnp.maximum(acc + b2_ref[...], 0.0)              # bn2 bias + ReLU
    out = jnp.dot(h.astype(jnp.bfloat16), w3_ref[...],
                  preferred_element_type=jnp.float32)
    out = out + b3_ref[...] + res_ref[...]               # bn3 bias + identity
    o_ref[...] = jnp.maximum(out, 0.0)                   # final ReLU


# ----------------------------- pallas_call wrappers -------------------------

def conv1x1_bn(x_flat, w, b, relu):
    """x_flat: (N, M, Cin) f32, w: (Cin, Cout) bf16 (BN folded), b: (Cout,) f32."""
    n, m, cin = x_flat.shape
    cout = w.shape[1]
    kern = functools.partial(_conv1x1_kernel, relu=relu)
    flops = 2 * n * m * cin * cout
    bytes_acc = x_flat.size * 4 + w.size * 2 + b.size * 4 + n * m * cout * 4
    return pl.pallas_call(
        kern,
        grid=(n,),
        in_specs=[
            pl.BlockSpec((None, m, cin), lambda i: (i, 0, 0)),
            pl.BlockSpec((cin, cout), lambda i: (0, 0)),
            pl.BlockSpec((1, cout), lambda i: (0, 0)),
        ],
        out_specs=pl.BlockSpec((None, m, cout), lambda i: (i, 0, 0)),
        out_shape=jax.ShapeDtypeStruct((n, m, cout), jnp.float32),
        compiler_params=pltpu.CompilerParams(dimension_semantics=("parallel",)),
        cost_estimate=pl.CostEstimate(flops=flops, transcendentals=0,
                                      bytes_accessed=bytes_acc),
    )(x_flat, w, b.reshape(1, cout))


def conv3x3_conv1x1_residual(phases, w2, b2, w3, b3, residual, stride, oh, ow):
    n, p, hp, wp, width = phases.shape
    cout = w3.shape[1]
    m = oh * ow
    kern = functools.partial(_conv3x3_conv1x1_res_kernel, stride=stride,
                             oh=oh, ow=ow, width=width)
    flops = 2 * n * m * width * (9 * width + cout)
    bytes_acc = (phases.size * 4 + w2.size * 2 + w3.size * 2
                 + residual.size * 4 + n * m * cout * 4)
    return pl.pallas_call(
        kern,
        grid=(n,),
        in_specs=[
            pl.BlockSpec((None, p, hp, wp, width), lambda i: (i, 0, 0, 0, 0)),
            pl.BlockSpec((9, width, width), lambda i: (0, 0, 0)),
            pl.BlockSpec((1, width), lambda i: (0, 0)),
            pl.BlockSpec((width, cout), lambda i: (0, 0)),
            pl.BlockSpec((1, cout), lambda i: (0, 0)),
            pl.BlockSpec((None, m, cout), lambda i: (i, 0, 0)),
        ],
        out_specs=pl.BlockSpec((None, m, cout), lambda i: (i, 0, 0)),
        out_shape=jax.ShapeDtypeStruct((n, m, cout), jnp.float32),
        compiler_params=pltpu.CompilerParams(dimension_semantics=("parallel",)),
        cost_estimate=pl.CostEstimate(flops=flops, transcendentals=0,
                                      bytes_accessed=bytes_acc),
    )(phases, w2, b2.reshape(1, width), w3, b3.reshape(1, cout), residual)


# ----------------------------- JAX glue --------------------------------------

def _phase_decompose(xpad, stride):
    """(N, Hp, Wp, C) zero-padded map -> (N, stride*stride, Hp/s, Wp/s, C).

    After this space-to-depth repack, every 3x3 tap at output stride `s` is a
    CONTIGUOUS slice of one phase, so the kernel never needs strided access.
    """
    n, hp, wp, c = xpad.shape
    if stride == 1:
        return xpad.reshape(n, 1, hp, wp, c)
    s = stride
    hq, wq = hp // s, wp // s
    x = xpad.reshape(n, hq, s, wq, s, c)
    x = jnp.transpose(x, (0, 2, 4, 1, 3, 5))          # (N, s, s, hq, wq, C)
    return x.reshape(n, s * s, hq, wq, c)


def bottleneck_forward(params, x_nchw, *, stride, has_downsample):
    """Forward of torchvision-style Bottleneck (eval-mode BN folded into weights)."""
    x = jnp.transpose(x_nchw, (0, 2, 3, 1)).astype(jnp.float32)    # NHWC
    n, h, w, cin = x.shape
    width = params['w1'].shape[1]
    cout = params['w3'].shape[1]
    if stride == 2:
        assert h % 2 == 0 and w % 2 == 0

    # conv1 (1x1) + bn1 + ReLU
    h1 = conv1x1_bn(x.reshape(n, h * w, cin), params['w1'], params['b1'], relu=True)
    h1 = h1.reshape(n, h, w, width)

    # spatial output size of conv2 (3x3, pad=1, stride)
    oh = (h + 2 - 3) // stride + 1
    ow = (w + 2 - 3) // stride + 1

    # identity branch
    if has_downsample:
        x_ds = x[:, ::stride, ::stride, :]            # 1x1 stride-s sampling
        identity = conv1x1_bn(x_ds.reshape(n, oh * ow, cin),
                              params['wd'], params['bd'], relu=False)
    else:
        assert stride == 1 and cin == cout
        identity = x.reshape(n, oh * ow, cout)

    # conv2 (3x3, stride) + bn2 + ReLU + conv3 (1x1) + bn3 + residual + ReLU (one kernel)
    h1p = jnp.pad(h1, ((0, 0), (1, 1), (1, 1), (0, 0)))
    phases = _phase_decompose(h1p, stride)
    out = conv3x3_conv1x1_residual(phases, params['w2'], params['b2'],
                                   params['w3'], params['b3'],
                                   identity, stride, oh, ow)
    return jnp.transpose(out.reshape(n, oh, ow, cout), (0, 3, 1, 2))   # back to NCHW


# ----------------------------- Parameters ------------------------------------

def build_bottleneck_params(key, inplanes, planes, has_downsample):
    """Kaiming(fan_out) conv weights; eval-mode BN (fresh stats) folded into them."""
    width = planes                      # base_width=64, groups=1, dilation=1
    cout = planes * 4                   # Bottleneck.expansion = 4
    ks = jax.random.split(key, 4)

    def kaiming(k, shape, fan_out):
        return jax.random.normal(k, shape, jnp.float32) * (2.0 / fan_out) ** 0.5

    def bn_fold(w, c):
        # gamma=1, beta=0, running_mean=0, running_var=1  ->  scale=1/sqrt(1+eps), bias=0
        gamma = jnp.ones((c,), jnp.float32)
        beta = jnp.zeros((c,), jnp.float32)
        mean = jnp.zeros((c,), jnp.float32)
        var = jnp.ones((c,), jnp.float32)
        scale = gamma / jnp.sqrt(var + BN_EPS)
        return (w * scale).astype(jnp.bfloat16), (beta - mean * scale)

    w1, b1 = bn_fold(kaiming(ks[0], (inplanes, width), width), width)
    w2_4d = kaiming(ks[1], (3, 3, width, width), 9 * width)
    w2, b2 = bn_fold(w2_4d, width)
    w2 = w2.reshape(9, width, width)                       # tap-major (i*3+j)
    w3, b3 = bn_fold(kaiming(ks[2], (width, cout), cout), cout)
    params = dict(w1=w1, b1=b1, w2=w2, b2=b2, w3=w3, b3=b3)
    if has_downsample:
        wd, bd = bn_fold(kaiming(ks[3], (inplanes, cout), cout), cout)
        params.update(wd=wd, bd=bd)
    return params


# ----------------------------- Pure-JAX reference -----------------------------

def _ref_bottleneck(params, x_nchw, stride, has_downsample):
    x = jnp.transpose(x_nchw, (0, 2, 3, 1)).astype(jnp.float32)

    def conv(inp, w4, s, pad):
        return jax.lax.conv_general_dilated(
            inp, w4.astype(jnp.float32), (s, s), pad,
            dimension_numbers=("NHWC", "HWIO", "NHWC"))

    w1 = params['w1'].astype(jnp.float32)[None, None]
    h = jax.nn.relu(conv(x, w1, 1, "VALID") + params['b1'])
    width = h.shape[-1]
    w2 = params['w2'].astype(jnp.float32).reshape(3, 3, width, width)
    h = jax.nn.relu(conv(h, w2, stride, [(1, 1), (1, 1)]) + params['b2'])
    w3 = params['w3'].astype(jnp.float32)[None, None]
    out = conv(h, w3, 1, "VALID") + params['b3']
    if has_downsample:
        wd = params['wd'].astype(jnp.float32)[None, None]
        identity = conv(x, wd, stride, "VALID") + params['bd']
    else:
        identity = x
    out = jax.nn.relu(out + identity)
    return jnp.transpose(out, (0, 3, 1, 2))


# ----------------------------- Main -------------------------------------------

if __name__ == "__main__":
    key = jax.random.PRNGKey(0)
    kp1, kx1, kp2, kx2 = jax.random.split(key, 4)

    # Case 1: stride-2 Bottleneck with conv1x1+bn downsample (inplanes=64, planes=32)
    inplanes, planes, stride = 64, 32, 2
    params = build_bottleneck_params(kp1, inplanes, planes, has_downsample=True)
    x = jax.random.normal(kx1, (2, inplanes, 16, 16), jnp.float32)
    fwd = jax.jit(functools.partial(bottleneck_forward, stride=stride,
                                    has_downsample=True))
    y = fwd(params, x)
    jax.block_until_ready(y)
    assert y.shape == (2, 4 * planes, 8, 8)
    y_ref = _ref_bottleneck(params, x, stride, True)
    err = float(jnp.max(jnp.abs(y - y_ref)))
    assert err < 0.2, f"case1 max abs error {err}"     # bf16-matmul tolerance

    # Case 2: stride-1 identity Bottleneck (inplanes == 4*planes, no downsample)
    inplanes2, planes2 = 128, 32
    params2 = build_bottleneck_params(kp2, inplanes2, planes2, has_downsample=False)
    x2 = jax.random.normal(kx2, (2, inplanes2, 8, 8), jnp.float32)
    fwd2 = jax.jit(functools.partial(bottleneck_forward, stride=1,
                                     has_downsample=False))
    y2 = fwd2(params2, x2)
    jax.block_until_ready(y2)
    assert y2.shape == (2, 128, 8, 8)
    y2_ref = _ref_bottleneck(params2, x2, 1, False)
    err2 = float(jnp.max(jnp.abs(y2 - y2_ref)))
    assert err2 < 0.2, f"case2 max abs error {err2}"

    # TODO(synk): training-mode BatchNorm (batch statistics) is not implemented;
    # BN is evaluated in inference mode with its freshly-initialized running stats,
    # folded into the conv weights.
    print("KERNEL_OK")
</pallas_src>

<mosaic_0001>
module attributes {stable_mosaic.version = 11 : i64} {
  func.func @_conv1x1_kernel(%arg0: i32, %arg1: memref<1x256x64xf32, #tpu.memory_space<vmem>>, %arg2: memref<64x32xbf16, #tpu.memory_space<vmem>>, %arg3: memref<1x32xf32, #tpu.memory_space<vmem>>, %arg4: memref<1x256x32xf32, #tpu.memory_space<vmem>>) attributes {dimension_semantics = [#tpu.dimension_semantics<parallel>], iteration_bounds = array<i64: 2>, scalar_prefetch = 0 : i64, scratch_operands = 0 : i64, tpu.core_type = #tpu.core_type<tc>, window_params = [{transform_indices = @transform_0, window_bounds = array<i64: 1, 256, 64>}, {pipeline_mode = #tpu.pipeline_mode<synchronous>, transform_indices = @transform_1, window_bounds = array<i64: 64, 32>}, {pipeline_mode = #tpu.pipeline_mode<synchronous>, transform_indices = @transform_2, window_bounds = array<i64: 1, 32>}, {transform_indices = @transform_3, window_bounds = array<i64: 1, 256, 32>}]} {
    %c0 = arith.constant 0 : index
    %c0_0 = arith.constant 0 : index
    %c0_1 = arith.constant 0 : index
    %0 = vector.load %arg1[%c0, %c0_0, %c0_1] : memref<1x256x64xf32, #tpu.memory_space<vmem>>, vector<1x256x64xf32>
    %1 = vector.shape_cast %0 : vector<1x256x64xf32> to vector<256x64xf32>
    %2 = arith.truncf %1 : vector<256x64xf32> to vector<256x64xbf16>
    %c0_2 = arith.constant 0 : index
    %c0_3 = arith.constant 0 : index
    %3 = vector.load %arg2[%c0_2, %c0_3] : memref<64x32xbf16, #tpu.memory_space<vmem>>, vector<64x32xbf16>
    %cst = arith.constant dense<0.000000e+00> : vector<256x32xf32>
    %4 = tpu.matmul %2, %3, %cst {dimension_numbers = #tpu.dot_dimension_numbers<[1], [0], [0], [1], [0, 0, 1, 1], [], []>} : vector<256x64xbf16>, vector<64x32xbf16>, vector<256x32xf32> -> vector<256x32xf32>
    %c0_4 = arith.constant 0 : index
    %c0_5 = arith.constant 0 : index
    %5 = vector.load %arg3[%c0_4, %c0_5] : memref<1x32xf32, #tpu.memory_space<vmem>>, vector<1x32xf32>
    %6 = vector.broadcast %5 : vector<1x32xf32> to vector<256x32xf32>
    %7 = arith.addf %4, %6 : vector<256x32xf32>
    %cst_6 = arith.constant 0.000000e+00 : f32
    %8 = vector.broadcast %cst_6 : f32 to vector<256x32xf32>
    %9 = arith.maximumf %7, %8 : vector<256x32xf32>
    %c0_7 = arith.constant 0 : index
    %c0_8 = arith.constant 0 : index
    %c0_9 = arith.constant 0 : index
    %10 = vector.load %arg4[%c0_7, %c0_8, %c0_9] : memref<1x256x32xf32, #tpu.memory_space<vmem>>, vector<1x256x32xf32>
    %11 = vector.shape_cast %10 : vector<1x256x32xf32> to vector<256x32xf32>
    %12 = vector.shape_cast %9 : vector<256x32xf32> to vector<1x256x32xf32>
    tpu.vector_store %arg4[%c0_7, %c0_8, %c0_9], %12 {strides = array<i32>} : memref<1x256x32xf32, #tpu.memory_space<vmem>>, vector<1x256x32xf32>,
    return
  }
  func.func @transform_0(%arg0: i32) -> (i32, i32, i32) {
    %c0_i32 = arith.constant 0 : i32
    %c0_i32_0 = arith.constant 0 : i32
    %c0_i32_1 = arith.constant 0 : i32
    return %arg0, %c0_i32, %c0_i32_0 : i32, i32, i32
  }
  func.func @transform_1(%arg0: i32) -> (i32, i32) {
    %c0_i32 = arith.constant 0 : i32
    %c0_i32_0 = arith.constant 0 : i32
    %c0_i32_1 = arith.constant 0 : i32
    return %c0_i32, %c0_i32_0 : i32, i32
  }
  func.func @transform_2(%arg0: i32) -> (i32, i32) {
    %c0_i32 = arith.constant 0 : i32
    %c0_i32_0 = arith.constant 0 : i32
    %c0_i32_1 = arith.constant 0 : i32
    return %c0_i32, %c0_i32_0 : i32, i32
  }
  func.func @transform_3(%arg0: i32) -> (i32, i32, i32) {
    %c0_i32 = arith.constant 0 : i32
    %c0_i32_0 = arith.constant 0 : i32
    %c0_i32_1 = arith.constant 0 : i32
    return %arg0, %c0_i32, %c0_i32_0 : i32, i32, i32
  }
}

module attributes {stable_mosaic.version = 11 : i64} {
  func.func @_conv1x1_kernel(%arg0: i32, %arg1: memref<1x64x64xf32, #tpu.memory_space<vmem>>, %arg2: memref<64x128xbf16, #tpu.memory_space<vmem>>, %arg3: memref<1x128xf32, #tpu.memory_space<vmem>>, %arg4: memref<1x64x128xf32, #tpu.memory_space<vmem>>) attributes {dimension_semantics = [#tpu.dimension_semantics<parallel>], iteration_bounds = array<i64: 2>, scalar_prefetch = 0 : i64, scratch_operands = 0 : i64, tpu.core_type = #tpu.core_type<tc>, window_params = [{transform_indices = @transform_0, window_bounds = array<i64: 1, 64, 64>}, {pipeline_mode = #tpu.pipeline_mode<synchronous>, transform_indices = @transform_1, window_bounds = array<i64: 64, 128>}, {pipeline_mode = #tpu.pipeline_mode<synchronous>, transform_indices = @transform_2, window_bounds = array<i64: 1, 128>}, {transform_indices = @transform_3, window_bounds = array<i64: 1, 64, 128>}]} {
    %c0 = arith.constant 0 : index
    %c0_0 = arith.constant 0 : index
    %c0_1 = arith.constant 0 : index
    %0 = vector.load %arg1[%c0, %c0_0, %c0_1] : memref<1x64x64xf32, #tpu.memory_space<vmem>>, vector<1x64x64xf32>
    %1 = vector.shape_cast %0 : vector<1x64x64xf32> to vector<64x64xf32>
    %2 = arith.truncf %1 : vector<64x64xf32> to vector<64x64xbf16>
    %c0_2 = arith.constant 0 : index
    %c0_3 = arith.constant 0 : index
    %3 = vector.load %arg2[%c0_2, %c0_3] : memref<64x128xbf16, #tpu.memory_space<vmem>>, vector<64x128xbf16>
    %cst = arith.constant dense<0.000000e+00> : vector<64x128xf32>
    %4 = tpu.matmul %2, %3, %cst {dimension_numbers = #tpu.dot_dimension_numbers<[1], [0], [0], [1], [0, 0, 1, 1], [], []>} : vector<64x64xbf16>, vector<64x128xbf16>, vector<64x128xf32> -> vector<64x128xf32>
    %c0_4 = arith.constant 0 : index
    %c0_5 = arith.constant 0 : index
    %5 = vector.load %arg3[%c0_4, %c0_5] : memref<1x128xf32, #tpu.memory_space<vmem>>, vector<1x128xf32>
    %6 = vector.broadcast %5 : vector<1x128xf32> to vector<64x128xf32>
    %7 = arith.addf %4, %6 : vector<64x128xf32>
    %c0_6 = arith.constant 0 : index
    %c0_7 = arith.constant 0 : index
    %c0_8 = arith.constant 0 : index
    %8 = vector.load %arg4[%c0_6, %c0_7, %c0_8] : memref<1x64x128xf32, #tpu.memory_space<vmem>>, vector<1x64x128xf32>
    %9 = vector.shape_cast %8 : vector<1x64x128xf32> to vector<64x128xf32>
    %10 = vector.shape_cast %7 : vector<64x128xf32> to vector<1x64x128xf32>
    tpu.vector_store %arg4[%c0_6, %c0_7, %c0_8], %10 {strides = array<i32>} : memref<1x64x128xf32, #tpu.memory_space<vmem>>, vector<1x64x128xf32>,
    return
  }
  func.func @transform_0(%arg0: i32) -> (i32, i32, i32) {
    %c0_i32 = arith.constant 0 : i32
    %c0_i32_0 = arith.constant 0 : i32
    %c0_i32_1 = arith.constant 0 : i32
    return %arg0, %c0_i32, %c0_i32_0 : i32, i32, i32
  }
  func.func @transform_1(%arg0: i32) -> (i32, i32) {
    %c0_i32 = arith.constant 0 : i32
    %c0_i32_0 = arith.constant 0 : i32
    %c0_i32_1 = arith.constant 0 : i32
    return %c0_i32, %c0_i32_0 : i32, i32
  }
  func.func @transform_2(%arg0: i32) -> (i32, i32) {
    %c0_i32 = arith.constant 0 : i32
    %c0_i32_0 = arith.constant 0 : i32
    %c0_i32_1 = arith.constant 0 : i32
    return %c0_i32, %c0_i32_0 : i32, i32
  }
  func.func @transform_3(%arg0: i32) -> (i32, i32, i32) {
    %c0_i32 = arith.constant 0 : i32
    %c0_i32_0 = arith.constant 0 : i32
    %c0_i32_1 = arith.constant 0 : i32
    return %arg0, %c0_i32, %c0_i32_0 : i32, i32, i32
  }
}

module attributes {stable_mosaic.version = 11 : i64} {
  func.func @_conv3x3_conv1x1_res_kernel(%arg0: i32, %arg1: memref<1x4x9x9x32xf32, #tpu.memory_space<vmem>>, %arg2: memref<9x32x32xbf16, #tpu.memory_space<vmem>>, %arg3: memref<1x32xf32, #tpu.memory_space<vmem>>, %arg4: memref<32x128xbf16, #tpu.memory_space<vmem>>, %arg5: memref<1x128xf32, #tpu.memory_space<vmem>>, %arg6: memref<1x64x128xf32, #tpu.memory_space<vmem>>, %arg7: memref<1x64x128xf32, #tpu.memory_space<vmem>>) attributes {dimension_semantics = [#tpu.dimension_semantics<parallel>], iteration_bounds = array<i64: 2>, scalar_prefetch = 0 : i64, scratch_operands = 0 : i64, tpu.core_type = #tpu.core_type<tc>, window_params = [{transform_indices = @transform_0, window_bounds = array<i64: 1, 4, 9, 9, 32>}, {pipeline_mode = #tpu.pipeline_mode<synchronous>, transform_indices = @transform_1, window_bounds = array<i64: 9, 32, 32>}, {pipeline_mode = #tpu.pipeline_mode<synchronous>, transform_indices = @transform_2, window_bounds = array<i64: 1, 32>}, {pipeline_mode = #tpu.pipeline_mode<synchronous>, transform_indices = @transform_3, window_bounds = array<i64: 32, 128>}, {pipeline_mode = #tpu.pipeline_mode<synchronous>, transform_indices = @transform_4, window_bounds = array<i64: 1, 128>}, {transform_indices = @transform_5, window_bounds = array<i64: 1, 64, 128>}, {transform_indices = @transform_6, window_bounds = array<i64: 1, 64, 128>}]} {
    %c0 = arith.constant 0 : index
    %c0_0 = arith.constant 0 : index
    %c0_1 = arith.constant 0 : index
    %c0_2 = arith.constant 0 : index
    %c0_3 = arith.constant 0 : index
    %0 = vector.load %arg1[%c0, %c0_0, %c0_1, %c0_2, %c0_3] : memref<1x4x9x9x32xf32, #tpu.memory_space<vmem>>, vector<1x4x9x9x32xf32>
    %1 = vector.shape_cast %0 : vector<1x4x9x9x32xf32> to vector<4x9x9x32xf32>
    %cst = arith.constant 0.000000e+00 : f32
    %2 = vector.broadcast %cst : f32 to vector<64x32xf32>
    %3 = vector.extract_strided_slice %1 {offsets = [0, 0, 0, 0], sizes = [1, 8, 8, 32], strides = [1, 1, 1, 1]} : vector<4x9x9x32xf32> to vector<1x8x8x32xf32>
    %4 = vector.shape_cast %3 : vector<1x8x8x32xf32> to vector<8x8x32xf32>
    %5 = vector.shape_cast %4 : vector<8x8x32xf32> to vector<64x32xf32>
    %6 = arith.truncf %5 : vector<64x32xf32> to vector<64x32xbf16>
    %c0_4 = arith.constant 0 : index
    %c0_5 = arith.constant 0 : index
    %c0_6 = arith.constant 0 : index
    %7 = vector.load %arg2[%c0_4, %c0_5, %c0_6] : memref<9x32x32xbf16, #tpu.memory_space<vmem>>, vector<1x32x32xbf16>
    %8 = vector.shape_cast %7 : vector<1x32x32xbf16> to vector<32x32xbf16>
    %cst_7 = arith.constant dense<0.000000e+00> : vector<64x32xf32>
    %9 = tpu.matmul %6, %8, %cst_7 {dimension_numbers = #tpu.dot_dimension_numbers<[1], [0], [0], [1], [0, 0, 1, 1], [], []>} : vector<64x32xbf16>, vector<32x32xbf16>, vector<64x32xf32> -> vector<64x32xf32>
    %10 = arith.addf %2, %9 : vector<64x32xf32>
    %11 = vector.extract_strided_slice %1 {offsets = [1, 0, 0, 0], sizes = [1, 8, 8, 32], strides = [1, 1, 1, 1]} : vector<4x9x9x32xf32> to vector<1x8x8x32xf32>
    %12 = vector.shape_cast %11 : vector<1x8x8x32xf32> to vector<8x8x32xf32>
    %13 = vector.shape_cast %12 : vector<8x8x32xf32> to vector<64x32xf32>
    %14 = arith.truncf %13 : vector<64x32xf32> to vector<64x32xbf16>
    %c1 = arith.constant 1 : index
    %c0_8 = arith.constant 0 : index
    %c0_9 = arith.constant 0 : index
    %15 = vector.load %arg2[%c1, %c0_8, %c0_9] : memref<9x32x32xbf16, #tpu.memory_space<vmem>>, vector<1x32x32xbf16>
    %16 = vector.shape_cast %15 : vector<1x32x32xbf16> to vector<32x32xbf16>
    %cst_10 = arith.constant dense<0.000000e+00> : vector<64x32xf32>
    %17 = tpu.matmul %14, %16, %cst_10 {dimension_numbers = #tpu.dot_dimension_numbers<[1], [0], [0], [1], [0, 0, 1, 1], [], []>} : vector<64x32xbf16>, vector<32x32xbf16>, vector<64x32xf32> -> vector<64x32xf32>
    %18 = arith.addf %10, %17 : vector<64x32xf32>
    %19 = vector.extract_strided_slice %1 {offsets = [0, 0, 1, 0], sizes = [1, 8, 8, 32], strides = [1, 1, 1, 1]} : vector<4x9x9x32xf32> to vector<1x8x8x32xf32>
    %20 = vector.shape_cast %19 : vector<1x8x8x32xf32> to vector<8x8x32xf32>
    %21 = vector.shape_cast %20 : vector<8x8x32xf32> to vector<64x32xf32>
    %22 = arith.truncf %21 : vector<64x32xf32> to vector<64x32xbf16>
    %c2 = arith.constant 2 : index
    %c0_11 = arith.constant 0 : index
    %c0_12 = arith.constant 0 : index
    %23 = vector.load %arg2[%c2, %c0_11, %c0_12] : memref<9x32x32xbf16, #tpu.memory_space<vmem>>, vector<1x32x32xbf16>
    %24 = vector.shape_cast %23 : vector<1x32x32xbf16> to vector<32x32xbf16>
    %cst_13 = arith.constant dense<0.000000e+00> : vector<64x32xf32>
    %25 = tpu.matmul %22, %24, %cst_13 {dimension_numbers = #tpu.dot_dimension_numbers<[1], [0], [0], [1], [0, 0, 1, 1], [], []>} : vector<64x32xbf16>, vector<32x32xbf16>, vector<64x32xf32> -> vector<64x32xf32>
    %26 = arith.addf %18, %25 : vector<64x32xf32>
    %27 = vector.extract_strided_slice %1 {offsets = [2, 0, 0, 0], sizes = [1, 8, 8, 32], strides = [1, 1, 1, 1]} : vector<4x9x9x32xf32> to vector<1x8x8x32xf32>
    %28 = vector.shape_cast %27 : vector<1x8x8x32xf32> to vector<8x8x32xf32>
    %29 = vector.shape_cast %28 : vector<8x8x32xf32> to vector<64x32xf32>
    %30 = arith.truncf %29 : vector<64x32xf32> to vector<64x32xbf16>
    %c3 = arith.constant 3 : index
    %c0_14 = arith.constant 0 : index
    %c0_15 = arith.constant 0 : index
    %31 = vector.load %arg2[%c3, %c0_14, %c0_15] : memref<9x32x32xbf16, #tpu.memory_space<vmem>>, vector<1x32x32xbf16>
    %32 = vector.shape_cast %31 : vector<1x32x32xbf16> to vector<32x32xbf16>
    %cst_16 = arith.constant dense<0.000000e+00> : vector<64x32xf32>
    %33 = tpu.matmul %30, %32, %cst_16 {dimension_numbers = #tpu.dot_dimension_numbers<[1], [0], [0], [1], [0, 0, 1, 1], [], []>} : vector<64x32xbf16>, vector<32x32xbf16>, vector<64x32xf32> -> vector<64x32xf32>
    %34 = arith.addf %26, %33 : vector<64x32xf32>
    %35 = vector.extract_strided_slice %1 {offsets = [3, 0, 0, 0], sizes = [1, 8, 8, 32], strides = [1, 1, 1, 1]} : vector<4x9x9x32xf32> to vector<1x8x8x32xf32>
    %36 = vector.shape_cast %35 : vector<1x8x8x32xf32> to vector<8x8x32xf32>
    %37 = vector.shape_cast %36 : vector<8x8x32xf32> to vector<64x32xf32>
    %38 = arith.truncf %37 : vector<64x32xf32> to vector<64x32xbf16>
    %c4 = arith.constant 4 : index
    %c0_17 = arith.constant 0 : index
    %c0_18 = arith.constant 0 : index
    %39 = vector.load %arg2[%c4, %c0_17, %c0_18] : memref<9x32x32xbf16, #tpu.memory_space<vmem>>, vector<1x32x32xbf16>
    %40 = vector.shape_cast %39 : vector<1x32x32xbf16> to vector<32x32xbf16>
    %cst_19 = arith.constant dense<0.000000e+00> : vector<64x32xf32>
    %41 = tpu.matmul %38, %40, %cst_19 {dimension_numbers = #tpu.dot_dimension_numbers<[1], [0], [0], [1], [0, 0, 1, 1], [], []>} : vector<64x32xbf16>, vector<32x32xbf16>, vector<64x32xf32> -> vector<64x32xf32>
    %42 = arith.addf %34, %41 : vector<64x32xf32>
    %43 = vector.extract_strided_slice %1 {offsets = [2, 0, 1, 0], sizes = [1, 8, 8, 32], strides = [1, 1, 1, 1]} : vector<4x9x9x32xf32> to vector<1x8x8x32xf32>
    %44 = vector.shape_cast %43 : vector<1x8x8x32xf32> to vector<8x8x32xf32>
    %45 = vector.shape_cast %44 : vector<8x8x32xf32> to vector<64x32xf32>
    %46 = arith.truncf %45 : vector<64x32xf32> to vector<64x32xbf16>
    %c5 = arith.constant 5 : index
    %c0_20 = arith.constant 0 : index
    %c0_21 = arith.constant 0 : index
    %47 = vector.load %arg2[%c5, %c0_20, %c0_21] : memref<9x32x32xbf16, #tpu.memory_space<vmem>>, vector<1x32x32xbf16>
    %48 = vector.shape_cast %47 : vector<1x32x32xbf16> to vector<32x32xbf16>
    %cst_22 = arith.constant dense<0.000000e+00> : vector<64x32xf32>
    %49 = tpu.matmul %46, %48, %cst_22 {dimension_numbers = #tpu.dot_dimension_numbers<[1], [0], [0], [1], [0, 0, 1, 1], [], []>} : vector<64x32xbf16>, vector<32x32xbf16>, vector<64x32xf32> -> vector<64x32xf32>
    %50 = arith.addf %42, %49 : vector<64x32xf32>
    %51 = vector.extract_strided_slice %1 {offsets = [0, 1, 0, 0], sizes = [1, 8, 8, 32], strides = [1, 1, 1, 1]} : vector<4x9x9x32xf32> to vector<1x8x8x32xf32>
    %52 = vector.shape_cast %51 : vector<1x8x8x32xf32> to vector<8x8x32xf32>
    %53 = vector.shape_cast %52 : vector<8x8x32xf32> to vector<64x32xf32>
    %54 = arith.truncf %53 : vector<64x32xf32> to vector<64x32xbf16>
    %c6 = arith.constant 6 : index
    %c0_23 = arith.constant 0 : index
    %c0_24 = arith.constant 0 : index
    %55 = vector.load %arg2[%c6, %c0_23, %c0_24] : memref<9x32x32xbf16, #tpu.memory_space<vmem>>, vector<1x32x32xbf16>
    %56 = vector.shape_cast %55 : vector<1x32x32xbf16> to vector<32x32xbf16>
    %cst_25 = arith.constant dense<0.000000e+00> : vector<64x32xf32>
    %57 = tpu.matmul %54, %56, %cst_25 {dimension_numbers = #tpu.dot_dimension_numbers<[1], [0], [0], [1], [0, 0, 1, 1], [], []>} : vector<64x32xbf16>, vector<32x32xbf16>, vector<64x32xf32> -> vector<64x32xf32>
    %58 = arith.addf %50, %57 : vector<64x32xf32>
    %59 = vector.extract_strided_slice %1 {offsets = [1, 1, 0, 0], sizes = [1, 8, 8, 32], strides = [1, 1, 1, 1]} : vector<4x9x9x32xf32> to vector<1x8x8x32xf32>
    %60 = vector.shape_cast %59 : vector<1x8x8x32xf32> to vector<8x8x32xf32>
    %61 = vector.shape_cast %60 : vector<8x8x32xf32> to vector<64x32xf32>
    %62 = arith.truncf %61 : vector<64x32xf32> to vector<64x32xbf16>
    %c7 = arith.constant 7 : index
    %c0_26 = arith.constant 0 : index
    %c0_27 = arith.constant 0 : index
    %63 = vector.load %arg2[%c7, %c0_26, %c0_27] : memref<9x32x32xbf16, #tpu.memory_space<vmem>>, vector<1x32x32xbf16>
    %64 = vector.shape_cast %63 : vector<1x32x32xbf16> to vector<32x32xbf16>
    %cst_28 = arith.constant dense<0.000000e+00> : vector<64x32xf32>
    %65 = tpu.matmul %62, %64, %cst_28 {dimension_numbers = #tpu.dot_dimension_numbers<[1], [0], [0], [1], [0, 0, 1, 1], [], []>} : vector<64x32xbf16>, vector<32x32xbf16>, vector<64x32xf32> -> vector<64x32xf32>
    %66 = arith.addf %58, %65 : vector<64x32xf32>
    %67 = vector.extract_strided_slice %1 {offsets = [0, 1, 1, 0], sizes = [1, 8, 8, 32], strides = [1, 1, 1, 1]} : vector<4x9x9x32xf32> to vector<1x8x8x32xf32>
    %68 = vector.shape_cast %67 : vector<1x8x8x32xf32> to vector<8x8x32xf32>
    %69 = vector.shape_cast %68 : vector<8x8x32xf32> to vector<64x32xf32>
    %70 = arith.truncf %69 : vector<64x32xf32> to vector<64x32xbf16>
    %c8 = arith.constant 8 : index
    %c0_29 = arith.constant 0 : index
    %c0_30 = arith.constant 0 : index
    %71 = vector.load %arg2[%c8, %c0_29, %c0_30] : memref<9x32x32xbf16, #tpu.memory_space<vmem>>, vector<1x32x32xbf16>
    %72 = vector.shape_cast %71 : vector<1x32x32xbf16> to vector<32x32xbf16>
    %cst_31 = arith.constant dense<0.000000e+00> : vector<64x32xf32>
    %73 = tpu.matmul %70, %72, %cst_31 {dimension_numbers = #tpu.dot_dimension_numbers<[1], [0], [0], [1], [0, 0, 1, 1], [], []>} : vector<64x32xbf16>, vector<32x32xbf16>, vector<64x32xf32> -> vector<64x32xf32>
    %74 = arith.addf %66, %73 : vector<64x32xf32>
    %c0_32 = arith.constant 0 : index
    %c0_33 = arith.constant 0 : index
    %75 = vector.load %arg3[%c0_32, %c0_33] : memref<1x32xf32, #tpu.memory_space<vmem>>, vector<1x32xf32>
    %76 = vector.broadcast %75 : vector<1x32xf32> to vector<64x32xf32>
    %77 = arith.addf %74, %76 : vector<64x32xf32>
    %cst_34 = arith.constant 0.000000e+00 : f32
    %78 = vector.broadcast %cst_34 : f32 to vector<64x32xf32>
    %79 = arith.maximumf %77, %78 : vector<64x32xf32>
    %80 = arith.truncf %79 : vector<64x32xf32> to vector<64x32xbf16>
    %c0_35 = arith.constant 0 : index
    %c0_36 = arith.constant 0 : index
    %81 = vector.load %arg4[%c0_35, %c0_36] : memref<32x128xbf16, #tpu.memory_space<vmem>>, vector<32x128xbf16>
    %cst_37 = arith.constant dense<0.000000e+00> : vector<64x128xf32>
    %82 = tpu.matmul %80, %81, %cst_37 {dimension_numbers = #tpu.dot_dimension_numbers<[1], [0], [0], [1], [0, 0, 1, 1], [], []>} : vector<64x32xbf16>, vector<32x128xbf16>, vector<64x128xf32> -> vector<64x128xf32>
    %c0_38 = arith.constant 0 : index
    %c0_39 = arith.constant 0 : index
    %83 = vector.load %arg5[%c0_38, %c0_39] : memref<1x128xf32, #tpu.memory_space<vmem>>, vector<1x128xf32>
    %84 = vector.broadcast %83 : vector<1x128xf32> to vector<64x128xf32>
    %85 = arith.addf %82, %84 : vector<64x128xf32>
    %c0_40 = arith.constant 0 : index
    %c0_41 = arith.constant 0 : index
    %c0_42 = arith.constant 0 : index
    %86 = vector.load %arg6[%c0_40, %c0_41, %c0_42] : memref<1x64x128xf32, #tpu.memory_space<vmem>>, vector<1x64x128xf32>
    %87 = vector.shape_cast %86 : vector<1x64x128xf32> to vector<64x128xf32>
    %88 = arith.addf %85, %87 : vector<64x128xf32>
    %cst_43 = arith.constant 0.000000e+00 : f32
    %89 = vector.broadcast %cst_43 : f32 to vector<64x128xf32>
    %90 = arith.maximumf %88, %89 : vector<64x128xf32>
    %c0_44 = arith.constant 0 : index
    %c0_45 = arith.constant 0 : index
    %c0_46 = arith.constant 0 : index
    %91 = vector.load %arg7[%c0_44, %c0_45, %c0_46] : memref<1x64x128xf32, #tpu.memory_space<vmem>>, vector<1x64x128xf32>
    %92 = vector.shape_cast %91 : vector<1x64x128xf32> to vector<64x128xf32>
    %93 = vector.shape_cast %90 : vector<64x128xf32> to vector<1x64x128xf32>
    tpu.vector_store %arg7[%c0_44, %c0_45, %c0_46], %93 {strides = array<i32>} : memref<1x64x128xf32, #tpu.memory_space<vmem>>, vector<1x64x128xf32>,
    return
  }
  func.func @transform_0(%arg0: i32) -> (i32, i32, i32, i32, i32) {
    %c0_i32 = arith.constant 0 : i32
    %c0_i32_0 = arith.constant 0 : i32
    %c0_i32_1 = arith.constant 0 : i32
    %c0_i32_2 = arith.constant 0 : i32
    %c0_i32_3 = arith.constant 0 : i32
    return %arg0, %c0_i32, %c0_i32_0, %c0_i32_1, %c0_i32_2 : i32, i32, i32, i32, i32
  }
  func.func @transform_1(%arg0: i32) -> (i32, i32, i32) {
    %c0_i32 = arith.constant 0 : i32
    %c0_i32_0 = arith.constant 0 : i32
    %c0_i32_1 = arith.constant 0 : i32
    %c0_i32_2 = arith.constant 0 : i32
    return %c0_i32, %c0_i32_0, %c0_i32_1 : i32, i32, i32
  }
  func.func @transform_2(%arg0: i32) -> (i32, i32) {
    %c0_i32 = arith.constant 0 : i32
    %c0_i32_0 = arith.constant 0 : i32
    %c0_i32_1 = arith.constant 0 : i32
    return %c0_i32, %c0_i32_0 : i32, i32
  }
  func.func @transform_3(%arg0: i32) -> (i32, i32) {
    %c0_i32 = arith.constant 0 : i32
    %c0_i32_0 = arith.constant 0 : i32
    %c0_i32_1 = arith.constant 0 : i32
    return %c0_i32, %c0_i32_0 : i32, i32
  }
  func.func @transform_4(%arg0: i32) -> (i32, i32) {
    %c0_i32 = arith.constant 0 : i32
    %c0_i32_0 = arith.constant 0 : i32
    %c0_i32_1 = arith.constant 0 : i32
    return %c0_i32, %c0_i32_0 : i32, i32
  }
  func.func @transform_5(%arg0: i32) -> (i32, i32, i32) {
    %c0_i32 = arith.constant 0 : i32
    %c0_i32_0 = arith.constant 0 : i32
    %c0_i32_1 = arith.constant 0 : i32
    return %arg0, %c0_i32, %c0_i32_0 : i32, i32, i32
  }
  func.func @transform_6(%arg0: i32) -> (i32, i32, i32) {
    %c0_i32 = arith.constant 0 : i32
    %c0_i32_0 = arith.constant 0 : i32
    %c0_i32_1 = arith.constant 0 : i32
    return %arg0, %c0_i32, %c0_i32_0 : i32, i32, i32
  }
}

</mosaic_0001>

<llo_original>
// kernel: bottleneck_forward.3
$region0: #{bottleneck_forward.3}
  #allocation0 [shape = 'u32[]', space=smem, size = 0x4, offset = 0x4, fixed_abs, tag = 'smem constant byte address 0x4 - core index']
  #allocation1 [shape = 'u32[144,128]{1,0:T(1,128)}', space=vmem, size = 0x12000, scoped, tag = 'internal scratch']
  %s0 = inlined_call_operand.hbm [shape: f32[2,256,64], index: 0, kind: input, shape index: {}]
  %s1 = inlined_call_operand.vmem [shape: bf16[64,32], index: 1, kind: input, shape index: {}]
  %s2 = inlined_call_operand.vmem [shape: f32[1,32], index: 2, kind: input, shape index: {}]
  %s3 = inlined_call_operand.vmem [shape: f32[2,256,32], index: 3, kind: output, shape index: {}]
  %s4 = sld [smem:[#allocation0]]
  $region49: #{bottleneck_forward.3} parent=0
    _
  %s6 = ssub.s32 1, %s4
  %s7 = scalar_select 0, %s6, %s4
  $region1: #{bottleneck_forward.3} parent=0
    #allocation2 [shape = 'u8[262144]{0}', space=vmem, size = 0x40000, scoped, tag = 'input window, operand 0']
    #allocation3 [shape = 's32[2]{0}', space=sflag, size = 0x8, scoped, tag = 'scoped memory for bottleneck_forward.3']
    %8 = vsyncpa [#allocation3], 0
    %s9 = scalar_lea.sflag [#allocation3], 1
    %10 = vsyncpa %s9, 0
    loop: start=0, step=1, limit=4
    $region2: #{bottleneck_forward.3} parent=1 // loop_pre_header
      _
    $region3: #{bottleneck_forward.3} parent=1 // loop_header
      %s12 = sphi 0, %s16
      %p13 = scmp.ge.s32.totalorder %s12, 4
      %s22 = sphi 0, %s24
      %s25 = sphi 0, %s22
      %s26 = sphi 0, %s25
      %s42 = sphi 0, %s26
      %s46 = sphi 0, %s46
      %s48 = sphi 0, %s46
      %s49 = sphi 0, %s48
      %s63 = sphi 0, %s49
      %s67 = sphi 0, %s67
      %s69 = sphi 0, %s67
      %s70 = sphi 0, %s69
      %s84 = sphi 0, %s70
      %s90 = sphi 0, %s92
      %s93 = sphi 0, %s90
      %s94 = sphi 0, %s93
      %s110 = sphi 0, %s94
    $region4: #{bottleneck_forward.3} parent=1 // loop_header_branch
      %15 = sbr.rel (%p13) target = $region8
    $region5: #{bottleneck_forward.3} parent=1 // loop_body
      %s17 = ssub.s32 %s12, 1
      %s18 = ssub.s32 %s12, 2
      %s19 = sadd.s32 %s12, 1
      %s20 = ssub.s32 %s12, %s19
      %p21 = scmp.eq.s32.totalorder %s20, 0
      %s23 = sadd.s32 %s22, 1
      %s24 = scalar_select %p21, %s22, %s23
      %p27 = pneg %p21
      %p28 = scmp.eq.s32.totalorder %s12, 1
      %p29 = por %p27, %p28
      %p30 = scmp.ne.s32.totalorder %s22, %s25
      %p31 = scmp.eq.s32.totalorder %s12, 0
      %p32 = por %p30, %p31
      %p33 = scmp.ne.s32.totalorder %s22, %s25
      %p34 = scmp.eq.s32.totalorder %s17, 1
      %p35 = por %p33, %p34
      %p36 = scmp.ne.s32.totalorder %s25, %s26
      %p37 = scmp.eq.s32.totalorder %s17, 0
      %p38 = por %p36, %p37
      %p39 = scmp.ne.s32.totalorder %s25, %s26
      %p40 = scmp.eq.s32.totalorder %s18, 1
      %p41 = por %p39, %p40
      %p43 = scmp.ne.s32.totalorder %s26, %s42
      %p44 = scmp.eq.s32.totalorder %s18, 0
      %p45 = por %p43, %p44
      %s47 = sadd.s32 %s46, 1
      %p50 = scmp.eq.s32.totalorder %s12, 1
      %p51 = scmp.ne.s32.totalorder %s46, %s48
      %p52 = scmp.eq.s32.totalorder %s12, 0
      %p53 = por %p51, %p52
      %p54 = scmp.ne.s32.totalorder %s46, %s48
      %p55 = scmp.eq.s32.totalorder %s17, 1
      %p56 = por %p54, %p55
      %p57 = scmp.ne.s32.totalorder %s48, %s49
      %p58 = scmp.eq.s32.totalorder %s17, 0
      %p59 = por %p57, %p58
      %p60 = scmp.ne.s32.totalorder %s48, %s49
      %p61 = scmp.eq.s32.totalorder %s18, 1
      %p62 = por %p60, %p61
      %p64 = scmp.ne.s32.totalorder %s49, %s63
      %p65 = scmp.eq.s32.totalorder %s18, 0
      %p66 = por %p64, %p65
      %s68 = sadd.s32 %s67, 1
      %p71 = scmp.eq.s32.totalorder %s12, 1
      %p72 = scmp.ne.s32.totalorder %s67, %s69
      %p73 = scmp.eq.s32.totalorder %s12, 0
      %p74 = por %p72, %p73
      %p75 = scmp.ne.s32.totalorder %s67, %s69
      %p76 = scmp.eq.s32.totalorder %s17, 1
      %p77 = por %p75, %p76
      %p78 = scmp.ne.s32.totalorder %s69, %s70
      %p79 = scmp.eq.s32.totalorder %s17, 0
      %p80 = por %p78, %p79
      %p81 = scmp.ne.s32.totalorder %s69, %s70
      %p82 = scmp.eq.s32.totalorder %s18, 1
      %p83 = por %p81, %p82
      %p85 = scmp.ne.s32.totalorder %s70, %s84
      %p86 = scmp.eq.s32.totalorder %s18, 0
      %p87 = por %p85, %p86
      %s88 = ssub.s32 %s12, %s19
      %p89 = scmp.eq.s32.totalorder %s88, 0
      %s91 = sadd.s32 %s90, 1
      %s92 = scalar_select %p89, %s90, %s91
      %p95 = pneg %p89
      %p96 = scmp.eq.s32.totalorder %s12, 1
      %p97 = por %p95, %p96
      %p98 = scmp.ne.s32.totalorder %s90, %s93
      %p99 = scmp.eq.s32.totalorder %s12, 0
      %p100 = por %p98, %p99
      %p101 = scmp.ne.s32.totalorder %s90, %s93
      %p102 = scmp.eq.s32.totalorder %s17, 1
      %p103 = por %p101, %p102
      %p104 = scmp.ne.s32.totalorder %s93, %s94
      %p105 = scmp.eq.s32.totalorder %s17, 0
      %p106 = por %p104, %p105
      %p107 = scmp.ne.s32.totalorder %s93, %s94
      %p108 = scmp.eq.s32.totalorder %s18, 1
      %p109 = por %p107, %p108
      %p111 = scmp.ne.s32.totalorder %s94, %s110
      %p112 = scmp.eq.s32.totalorder %s18, 0
      %p113 = por %p111, %p112
      %p114 = scmp.le.s32.totalorder 1, %s12
      %p115 = scmp.lt.s32.totalorder %s12, 3
      %p116 = pnand %p114, %p115
      %p117 = pneg %p116
      // Predicated region
      $region9: #{bottleneck_forward.3} parent=5 // pred_check
        _
      $region10: #{bottleneck_forward.3} parent=5 // pred_check_branch
        %119 = sbr.rel (%p116) target = $region12
      $region11: #{bottleneck_forward.3} parent=5 // pred_region
        %s120 = ssub.s32 %s12, 1
        // Predicated region
        $region13: #{bottleneck_forward.3} parent=11 // pred_check
          %p121 = pneg %p59
        $region14: #{bottleneck_forward.3} parent=11 // pred_check_branch
          %123 = sbr.rel (%p121) target = $region16
        $region15: #{bottleneck_forward.3} parent=11 // pred_region
          _
        $region16: #{bottleneck_forward.3} parent=11 // pred_fallthru
          _
        // Predicated region
        $region17: #{bottleneck_forward.3} parent=11 // pred_check
          %p124 = pneg %p80
        $region18: #{bottleneck_forward.3} parent=11 // pred_check_branch
          %126 = sbr.rel (%p124) target = $region20
        $region19: #{bottleneck_forward.3} parent=11 // pred_region
          _
        $region20: #{bottleneck_forward.3} parent=11 // pred_fallthru
          _
      $region12: #{bottleneck_forward.3} parent=5 // pred_fallthru
        _
      %p127 = scmp.lt.s32.totalorder %s12, 2
      // Predicated region
      $region21: #{bottleneck_forward.3} parent=5 // pred_check
        %p128 = pneg %p127
      $region22: #{bottleneck_forward.3} parent=5 // pred_check_branch
        %130 = sbr.rel (%p128) target = $region24
      $region23: #{bottleneck_forward.3} parent=5 // pred_region
        // Predicated region
        $region25: #{bottleneck_forward.3} parent=23 // pred_check
          %p131 = pneg %p32
        $region26: #{bottleneck_forward.3} parent=23 // pred_check_branch
          %133 = sbr.rel (%p131) target = $region28
        $region27: #{bottleneck_forward.3} parent=23 // pred_region
          %s134 = sand.u32 %s22, 1
          %s135 = scalar_lea.sflag [#allocation3], %s134
          %s136 = sand.u32 %s22, 1
          %s137 = smul.addr %s136, 256
          %s138 = scalar_lea.vmem [#allocation2], %s137
          %s140 = ssub.s32 4096, 4096
          %141 = vsyncadd %s135, %s140
          %s142 = smul.addr %s12, 32
          %s143 = smul.addr %s142, 128
          %s144 = scalar_lea.hbm %s0, %s143
          %s145 = sshll.u32 %s138, 4
          %s146 = int_to_ptr.vmem [resolvable:$true] %s145
          %151 = dma.hbm_to_vmem [thread:$0]  %s144, 4096, %s146, %s135, 128, 128, 8
        $region28: #{bottleneck_forward.3} parent=23 // pred_fallthru
          _
      $region24: #{bottleneck_forward.3} parent=5 // pred_fallthru
        _
      %p152 = scmp.le.s32.totalorder 1, %s12
      %p153 = scmp.lt.s32.totalorder %s12, 3
      %p154 = pnand %p152, %p153
      %p155 = pneg %p154
      // Predicated region
      $region29: #{bottleneck_forward.3} parent=5 // pred_check
        _
      $region30: #{bottleneck_forward.3} parent=5 // pred_check_branch
        %157 = sbr.rel (%p154) target = $region32
      $region31: #{bottleneck_forward.3} parent=5 // pred_region
        %s158 = ssub.s32 %s12, 1
        %s159 = sand.u32 %s25, 1
        %s160 = scalar_lea.sflag [#allocation3], %s159
        %s161 = sand.u32 %s25, 1
        %s162 = smul.addr %s161, 256
        %s163 = scalar_lea.vmem [#allocation2], %s162
        // Predicated region
        $region33: #{bottleneck_forward.3} parent=31 // pred_check
          %p164 = pneg %p38
        $region34: #{bottleneck_forward.3} parent=31 // pred_check_branch
          %166 = sbr.rel (%p164) target = $region36
        $region35: #{bottleneck_forward.3} parent=31 // pred_region
          %167 = dma.done %s160, 4096
        $region36: #{bottleneck_forward.3} parent=31 // pred_fallthru
          _
        %s168 = sand.u32 %s25, 1
        %s169 = scalar_lea.sflag [#allocation3], %s168
        %s170 = sand.u32 %s25, 1
        %s171 = smul.addr %s170, 256
        %s172 = scalar_lea.vmem [#allocation2], %s171
        %p173 = pneg %p38
        %p174 = pneg %p35
        %p175 = pneg %p59
        %p176 = pneg %p56
        %p177 = pneg %p80
        %p178 = pneg %p77
        %p179 = pneg %p106
        %p180 = pneg %p103
        %p181 = scmp.lt.s32.totalorder %s17, 1
        %s182 = scalar_select %p181, %s17, 1
        %s183 = smul.addr %s182, 32
        %s184 = smul.addr %s183, 8
        %s185 = scalar_lea.vmem %s3, %s184
        %p186 = scmp.lt.s32.totalorder %s17, 1
        %s187 = scalar_select %p186, %s17, 1
        %s188 = smul.addr %s187, 32
        %s189 = smul.addr %s188, 8
        %s190 = scalar_lea.vmem %s3, %s189
        %v192 = vld [vmem:[%s163] sm:$0xff]
        %v193 = vld [vmem:[%s163 + $0x8] sm:$0xff]
        %v194 = vld [vmem:[%s163 + $0x10] sm:$0xff]
        %v195 = vld [vmem:[%s163 + $0x18] sm:$0xff]
        %v196 = vld [vmem:[%s163 + $0x20] sm:$0xff]
        %v197 = vld [vmem:[%s163 + $0x28] sm:$0xff]
        %v198 = vld [vmem:[%s163 + $0x30] sm:$0xff]
        %v199 = vld [vmem:[%s163 + $0x38] sm:$0xff]
        %v200 = vld [vmem:[%s163 + $0x40] sm:$0xff]
        %v201 = vld [vmem:[%s163 + $0x48] sm:$0xff]
        %v202 = vld [vmem:[%s163 + $0x50] sm:$0xff]
        %v203 = vld [vmem:[%s163 + $0x58] sm:$0xff]
        %v204 = vld [vmem:[%s163 + $0x60] sm:$0xff]
        %v205 = vld [vmem:[%s163 + $0x68] sm:$0xff]
        %v206 = vld [vmem:[%s163 + $0x70] sm:$0xff]
        %v207 = vld [vmem:[%s163 + $0x78] sm:$0xff]
        %v208 = vld [vmem:[%s163 + $0x80] sm:$0xff]
        %v209 = vld [vmem:[%s163 + $0x88] sm:$0xff]
        %v210 = vld [vmem:[%s163 + $0x90] sm:$0xff]
        %v211 = vld [vmem:[%s163 + $0x98] sm:$0xff]
        %v212 = vld [vmem:[%s163 + $0xa0] sm:$0xff]
        %v213 = vld [vmem:[%s163 + $0xa8] sm:$0xff]
        %v214 = vld [vmem:[%s163 + $0xb0] sm:$0xff]
        %v215 = vld [vmem:[%s163 + $0xb8] sm:$0xff]
        %v216 = vld [vmem:[%s163 + $0xc0] sm:$0xff]
        %v217 = vld [vmem:[%s163 + $0xc8] sm:$0xff]
        %v218 = vld [vmem:[%s163 + $0xd0] sm:$0xff]
        %v219 = vld [vmem:[%s163 + $0xd8] sm:$0xff]
        %v220 = vld [vmem:[%s163 + $0xe0] sm:$0xff]
        %v221 = vld [vmem:[%s163 + $0xe8] sm:$0xff]
        %v222 = vld [vmem:[%s163 + $0xf0] sm:$0xff]
        %v223 = vld [vmem:[%s163 + $0xf8] sm:$0xff]
        %v224 = vpack.c.bf16 %v193, %v192
        %v225 = vpack.c.bf16 %v195, %v194
        %v226 = vpack.c.bf16 %v197, %v196
        %v227 = vpack.c.bf16 %v199, %v198
        %v228 = vpack.c.bf16 %v201, %v200
        %v229 = vpack.c.bf16 %v203, %v202
        %v230 = vpack.c.bf16 %v205, %v204
        %v231 = vpack.c.bf16 %v207, %v206
        %v232 = vpack.c.bf16 %v209, %v208
        %v233 = vpack.c.bf16 %v211, %v210
        %v234 = vpack.c.bf16 %v213, %v212
        %v235 = vpack.c.bf16 %v215, %v214
        %v236 = vpack.c.bf16 %v217, %v216
        %v237 = vpack.c.bf16 %v219, %v218
        %v238 = vpack.c.bf16 %v221, %v220
        %v239 = vpack.c.bf16 %v223, %v222
        %v240 = vld [vmem:[%s1] sm:$0xf]
        %v241 = vld [vmem:[%s1 + $0x4] sm:$0xf]
        %v242 = vld [vmem:[%s1 + $0x8] sm:$0xf]
        %v243 = vld [vmem:[%s1 + $0xc] sm:$0xf]
        %v244 = vld [vmem:[%s1 + $0x10] sm:$0xf]
        %v245 = vld [vmem:[%s1 + $0x14] sm:$0xf]
        %v246 = vld [vmem:[%s1 + $0x18] sm:$0xf]
        %v247 = vld [vmem:[%s1 + $0x1c] sm:$0xf]
        %v248 = vld [vmem:[%s2] sm:$0x1]
        %v250 = vlaneseq
        %v251 = vshrl.u32 %v250, 7
        %v252 = vsub.s32 0, %v251
        %v253 = vrot.slane %v248, %v252
        %v263 = vunpack.c.l.b16 %v240
        %v264 = vunpack.c.l.b16 %v241
        %v265 = vunpack.c.l.b16 %v242
        %v266 = vunpack.c.l.b16 %v243
        %v267 = vunpack.c.l.b16 %v244
        %v268 = vunpack.c.l.b16 %v245
        %v269 = vunpack.c.l.b16 %v246
        %v270 = vunpack.c.l.b16 %v247
        %v271 = vpack.c.b16 %v264, %v263
        %v272 = vpack.c.b16 %v266, %v265
        %v273 = vpack.c.b16 %v268, %v267
        %v274 = vpack.c.b16 %v270, %v269
        %vm279 = vcmask 523264
        %v281 = vsel %vm279, %v224, 0
        %v284 = vsel %vm279, %v225, 0
        %v287 = vsel %vm279, %v226, 0
        %v290 = vsel %vm279, %v227, 0
        %v293 = vsel %vm279, %v228, 0
        %v296 = vsel %vm279, %v229, 0
        %v299 = vsel %vm279, %v230, 0
        %v302 = vsel %vm279, %v231, 0
        %v305 = vsel %vm279, %v232, 0
        %v308 = vsel %vm279, %v233, 0
        %v311 = vsel %vm279, %v234, 0
        %v314 = vsel %vm279, %v235, 0
        %v317 = vsel %vm279, %v236, 0
        %v320 = vsel %vm279, %v237, 0
        %v323 = vsel %vm279, %v238, 0
        %v326 = vsel %vm279, %v239, 0
        %328 = vmatprep.subr.bf16.mxu0 0
        %329 = vmatpush1.bf16.msra.mxu0 %v271
        %330 = vmatprep.subr.bf16.mxu0 0
        %331 = vmatpush1.bf16.msra.mxu0 %v272
        %332 = vmatprep.subr.bf16.mxu0 0
        %333 = vmatpush1.bf16.msra.mxu0 %v273
        %334 = vmatprep.subr.bf16.mxu0 0
        %335 = vmatpush1.bf16.msra.mxu0 %v274
        %336 = vmatprep.subr.bf16.mxu0 0
        %337 = vmatpush1.bf16.msra.mxu0 0
        %338 = vmatprep.subr.bf16.mxu0 0
        %339 = vmatpush1.bf16.msra.mxu0 0
        %340 = vmatprep.subr.bf16.mxu0 0
        %341 = vmatpush1.bf16.msra.mxu0 0
        %342 = vmatprep.subr.bf16.mxu0 0
        %343 = vmatpush1.bf16.msra.mxu0 0
        %344 = vmatprep.subr.bf16.mxu0 0
        %345 = vmatpush1.bf16.msra.mxu0 0
        %346 = vmatprep.subr.bf16.mxu0 0
        %347 = vmatpush1.bf16.msra.mxu0 0
        %348 = vmatprep.subr.bf16.mxu0 0
        %349 = vmatpush1.bf16.msra.mxu0 0
        %350 = vmatprep.subr.bf16.mxu0 0
        %351 = vmatpush1.bf16.msra.mxu0 0
        %352 = vmatprep.subr.bf16.mxu0 0
        %353 = vmatpush1.bf16.msra.mxu0 0
        %354 = vmatprep.subr.bf16.mxu0 0
        %355 = vmatpush1.bf16.msra.mxu0 0
        %356 = vmatprep.subr.bf16.mxu0 0
        %357 = vmatpush1.bf16.msra.mxu0 0
        %358 = vmatprep.subr.bf16.mxu0 0
        %359 = vmatpush1.bf16.msra.mxu0 0
        %360 = vmatprep.mubr.bf16.mxu0 0
        %361 = vmatmul.mubr.bf16.gmra.mrb[0].mxu0 %v281
        %v362 = vpop.f32.mrb[0].mxu0
        %v363 = vadd.f32 %v253, %v362
        %v364 = vpop.f32.mrb[0].mxu0
        %v365 = vpop.f32.mrb[0].mxu0
        %v366 = vadd.f32 %v253, %v365
        %v367 = vpop.f32.mrb[0].mxu0
        %368 = vmatprep.mubr.bf16.mxu0 0
        %369 = vmatmul.mubr.bf16.gmra.mrb[0].mxu0 %v284
        %v370 = vpop.f32.mrb[0].mxu0
        %v371 = vadd.f32 %v253, %v370
        %v372 = vpop.f32.mrb[0].mxu0
        %v373 = vpop.f32.mrb[0].mxu0
        %v374 = vadd.f32 %v253, %v373
        %v375 = vpop.f32.mrb[0].mxu0
        %376 = vmatprep.mubr.bf16.mxu0 0
        %377 = vmatmul.mubr.bf16.gmra.mrb[0].mxu0 %v287
        %v378 = vpop.f32.mrb[0].mxu0
        %v379 = vadd.f32 %v253, %v378
        %v380 = vpop.f32.mrb[0].mxu0
        %v381 = vpop.f32.mrb[0].mxu0
        %v382 = vadd.f32 %v253, %v381
        %v383 = vpop.f32.mrb[0].mxu0
        %384 = vmatprep.mubr.bf16.mxu0 0
        %385 = vmatmul.mubr.bf16.gmra.mrb[0].mxu0 %v290
        %v386 = vpop.f32.mrb[0].mxu0
        %v387 = vadd.f32 %v253, %v386
        %v388 = vpop.f32.mrb[0].mxu0
        %v389 = vpop.f32.mrb[0].mxu0
        %v390 = vadd.f32 %v253, %v389
        %v391 = vpop.f32.mrb[0].mxu0
        %392 = vmatprep.mubr.bf16.mxu0 0
        %393 = vmatmul.mubr.bf16.gmra.mrb[0].mxu0 %v293
        %v394 = vpop.f32.mrb[0].mxu0
        %v395 = vadd.f32 %v253, %v394
        %v396 = vpop.f32.mrb[0].mxu0
        %v397 = vpop.f32.mrb[0].mxu0
        %v398 = vadd.f32 %v253, %v397
        %v399 = vpop.f32.mrb[0].mxu0
        %400 = vmatprep.mubr.bf16.mxu0 0
        %401 = vmatmul.mubr.bf16.gmra.mrb[0].mxu0 %v296
        %v402 = vpop.f32.mrb[0].mxu0
        %v403 = vadd.f32 %v253, %v402
        %v404 = vpop.f32.mrb[0].mxu0
        %v405 = vpop.f32.mrb[0].mxu0
        %v406 = vadd.f32 %v253, %v405
        %v407 = vpop.f32.mrb[0].mxu0
        %408 = vmatprep.mubr.bf16.mxu0 0
        %409 = vmatmul.mubr.bf16.gmra.mrb[0].mxu0 %v299
        %v410 = vpop.f32.mrb[0].mxu0
        %v411 = vadd.f32 %v253, %v410
        %v412 = vpop.f32.mrb[0].mxu0
        %v413 = vpop.f32.mrb[0].mxu0
        %v414 = vadd.f32 %v253, %v413
        %v415 = vpop.f32.mrb[0].mxu0
        %416 = vmatprep.mubr.bf16.mxu0 0
        %417 = vmatmul.mubr.bf16.gmra.mrb[0].mxu0 %v302
        %v418 = vpop.f32.mrb[0].mxu0
        %v419 = vadd.f32 %v253, %v418
        %v420 = vpop.f32.mrb[0].mxu0
        %v421 = vpop.f32.mrb[0].mxu0
        %v422 = vadd.f32 %v253, %v421
        %v423 = vpop.f32.mrb[0].mxu0
        %424 = vmatprep.mubr.bf16.mxu0 0
        %425 = vmatmul.mubr.bf16.gmra.mrb[0].mxu0 %v305
        %v426 = vpop.f32.mrb[0].mxu0
        %v427 = vadd.f32 %v253, %v426
        %v428 = vpop.f32.mrb[0].mxu0
        %v429 = vpop.f32.mrb[0].mxu0
        %v430 = vadd.f32 %v253, %v429
        %v431 = vpop.f32.mrb[0].mxu0
        %432 = vmatprep.mubr.bf16.mxu0 0
        %433 = vmatmul.mubr.bf16.gmra.mrb[0].mxu0 %v308
        %v434 = vpop.f32.mrb[0].mxu0
        %v435 = vadd.f32 %v253, %v434
        %v436 = vpop.f32.mrb[0].mxu0
        %v437 = vpop.f32.mrb[0].mxu0
        %v438 = vadd.f32 %v253, %v437
        %v439 = vpop.f32.mrb[0].mxu0
        %440 = vmatprep.mubr.bf16.mxu0 0
        %441 = vmatmul.mubr.bf16.gmra.mrb[0].mxu0 %v311
        %v442 = vpop.f32.mrb[0].mxu0
        %v443 = vadd.f32 %v253, %v442
        %v444 = vpop.f32.mrb[0].mxu0
        %v445 = vpop.f32.mrb[0].mxu0
        %v446 = vadd.f32 %v253, %v445
        %v447 = vpop.f32.mrb[0].mxu0
        %448 = vmatprep.mubr.bf16.mxu0 0
        %449 = vmatmul.mubr.bf16.gmra.mrb[0].mxu0 %v314
        %v450 = vpop.f32.mrb[0].mxu0
        %v451 = vadd.f32 %v253, %v450
        %v452 = vpop.f32.mrb[0].mxu0
        %v453 = vpop.f32.mrb[0].mxu0
        %v454 = vadd.f32 %v253, %v453
        %v455 = vpop.f32.mrb[0].mxu0
        %456 = vmatprep.mubr.bf16.mxu0 0
        %457 = vmatmul.mubr.bf16.gmra.mrb[0].mxu0 %v317
        %v458 = vpop.f32.mrb[0].mxu0
        %v459 = vadd.f32 %v253, %v458
        %v460 = vpop.f32.mrb[0].mxu0
        %v461 = vpop.f32.mrb[0].mxu0
        %v462 = vadd.f32 %v253, %v461
        %v463 = vpop.f32.mrb[0].mxu0
        %464 = vmatprep.mubr.bf16.mxu0 0
        %465 = vmatmul.mubr.bf16.gmra.mrb[0].mxu0 %v320
        %v466 = vpop.f32.mrb[0].mxu0
        %v467 = vadd.f32 %v253, %v466
        %v468 = vpop.f32.mrb[0].mxu0
        %v469 = vpop.f32.mrb[0].mxu0
        %v470 = vadd.f32 %v253, %v469
        %v471 = vpop.f32.mrb[0].mxu0
        %472 = vmatprep.mubr.bf16.mxu0 0
        %473 = vmatmul.mubr.bf16.gmra.mrb[0].mxu0 %v323
        %v474 = vpop.f32.mrb[0].mxu0
        %v475 = vadd.f32 %v253, %v474
        %v476 = vpop.f32.mrb[0].mxu0
        %v477 = vpop.f32.mrb[0].mxu0
        %v478 = vadd.f32 %v253, %v477
        %v479 = vpop.f32.mrb[0].mxu0
        %480 = vmatprep.mubr.bf16.mxu0 0
        %481 = vmatmul.mubr.bf16.gmra.mrb[0].mxu0 %v326
        %v482 = vpop.f32.mrb[0].mxu0
        %v483 = vadd.f32 %v253, %v482
        %v484 = vpop.f32.mrb[0].mxu0
        %v485 = vpop.f32.mrb[0].mxu0
        %v486 = vadd.f32 %v253, %v485
        %v487 = vpop.f32.mrb[0].mxu0
        %488 = vdwg.mxu0
        %v489 = vmax.f32 %v363, 0.0
        %v490 = vmax.f32 %v366, 0.0
        %v491 = vmax.f32 %v371, 0.0
        %v492 = vmax.f32 %v374, 0.0
        %v493 = vmax.f32 %v379, 0.0
        %v494 = vmax.f32 %v382, 0.0
        %v495 = vmax.f32 %v387, 0.0
        %v496 = vmax.f32 %v390, 0.0
        %v497 = vmax.f32 %v395, 0.0
        %v498 = vmax.f32 %v398, 0.0
        %v499 = vmax.f32 %v403, 0.0
        %v500 = vmax.f32 %v406, 0.0
        %v501 = vmax.f32 %v411, 0.0
        %v502 = vmax.f32 %v414, 0.0
        %v503 = vmax.f32 %v419, 0.0
        %v504 = vmax.f32 %v422, 0.0
        %v505 = vmax.f32 %v427, 0.0
        %v506 = vmax.f32 %v430, 0.0
        %v507 = vmax.f32 %v435, 0.0
        %v508 = vmax.f32 %v438, 0.0
        %v509 = vmax.f32 %v443, 0.0
        %v510 = vmax.f32 %v446, 0.0
        %v511 = vmax.f32 %v451, 0.0
        %v512 = vmax.f32 %v454, 0.0
        %v513 = vmax.f32 %v459, 0.0
        %v514 = vmax.f32 %v462, 0.0
        %v515 = vmax.f32 %v467, 0.0
        %v516 = vmax.f32 %v470, 0.0
        %v517 = vmax.f32 %v475, 0.0
        %v518 = vmax.f32 %v478, 0.0
        %v519 = vmax.f32 %v483, 0.0
        %v520 = vmax.f32 %v486, 0.0
        %vm521 = vcmask 261120
        %522 = vst.msk [vmem:[%s190] sm:$0xff] %vm521, %v489
        %523 = vst.msk [vmem:[%s190 + $0x8] sm:$0xff] %vm521, %v490
        %524 = vst.msk [vmem:[%s190 + $0x10] sm:$0xff] %vm521, %v491
        %525 = vst.msk [vmem:[%s190 + $0x18] sm:$0xff] %vm521, %v492
        %526 = vst.msk [vmem:[%s190 + $0x20] sm:$0xff] %vm521, %v493
        %527 = vst.msk [vmem:[%s190 + $0x28] sm:$0xff] %vm521, %v494
        %528 = vst.msk [vmem:[%s190 + $0x30] sm:$0xff] %vm521, %v495
        %529 = vst.msk [vmem:[%s190 + $0x38] sm:$0xff] %vm521, %v496
        %530 = vst.msk [vmem:[%s190 + $0x40] sm:$0xff] %vm521, %v497
        %531 = vst.msk [vmem:[%s190 + $0x48] sm:$0xff] %vm521, %v498
        %532 = vst.msk [vmem:[%s190 + $0x50] sm:$0xff] %vm521, %v499
        %533 = vst.msk [vmem:[%s190 + $0x58] sm:$0xff] %vm521, %v500
        %534 = vst.msk [vmem:[%s190 + $0x60] sm:$0xff] %vm521, %v501
        %535 = vst.msk [vmem:[%s190 + $0x68] sm:$0xff] %vm521, %v502
        %536 = vst.msk [vmem:[%s190 + $0x70] sm:$0xff] %vm521, %v503
        %537 = vst.msk [vmem:[%s190 + $0x78] sm:$0xff] %vm521, %v504
        %538 = vst.msk [vmem:[%s190 + $0x80] sm:$0xff] %vm521, %v505
        %539 = vst.msk [vmem:[%s190 + $0x88] sm:$0xff] %vm521, %v506
        %540 = vst.msk [vmem:[%s190 + $0x90] sm:$0xff] %vm521, %v507
        %541 = vst.msk [vmem:[%s190 + $0x98] sm:$0xff] %vm521, %v508
        %542 = vst.msk [vmem:[%s190 + $0xa0] sm:$0xff] %vm521, %v509
        %543 = vst.msk [vmem:[%s190 + $0xa8] sm:$0xff] %vm521, %v510
        %544 = vst.msk [vmem:[%s190 + $0xb0] sm:$0xff] %vm521, %v511
        %545 = vst.msk [vmem:[%s190 + $0xb8] sm:$0xff] %vm521, %v512
        %546 = vst.msk [vmem:[%s190 + $0xc0] sm:$0xff] %vm521, %v513
        %547 = vst.msk [vmem:[%s190 + $0xc8] sm:$0xff] %vm521, %v514
        %548 = vst.msk [vmem:[%s190 + $0xd0] sm:$0xff] %vm521, %v515
        %549 = vst.msk [vmem:[%s190 + $0xd8] sm:$0xff] %vm521, %v516
        %550 = vst.msk [vmem:[%s190 + $0xe0] sm:$0xff] %vm521, %v517
        %551 = vst.msk [vmem:[%s190 + $0xe8] sm:$0xff] %vm521, %v518
        %552 = vst.msk [vmem:[%s190 + $0xf0] sm:$0xff] %vm521, %v519
        %553 = vst.msk [vmem:[%s190 + $0xf8] sm:$0xff] %vm521, %v520
        %p554 = scmp.lt.s32.totalorder %s17, 1
        %s555 = scalar_select %p554, %s17, 1
        %s556 = smul.addr %s555, 32
        %s557 = smul.addr %s556, 8
        %s558 = scalar_lea.vmem %s3, %s557
        // Predicated region
        $region37: #{bottleneck_forward.3} parent=31 // pred_check
          %p559 = pneg %p103
        $region38: #{bottleneck_forward.3} parent=31 // pred_check_branch
          %561 = sbr.rel (%p559) target = $region40
        $region39: #{bottleneck_forward.3} parent=31 // pred_region
          _
        $region40: #{bottleneck_forward.3} parent=31 // pred_fallthru
          _
      $region32: #{bottleneck_forward.3} parent=5 // pred_fallthru
        _
      %p562 = scmp.le.s32.totalorder 2, %s12
      // Predicated region
      $region41: #{bottleneck_forward.3} parent=5 // pred_check
        %p563 = pneg %p562
      $region42: #{bottleneck_forward.3} parent=5 // pred_check_branch
        %565 = sbr.rel (%p563) target = $region44
      $region43: #{bottleneck_forward.3} parent=5 // pred_region
        %s566 = ssub.s32 %s12, 2
        // Predicated region
        $region45: #{bottleneck_forward.3} parent=43 // pred_check
          %p567 = pneg %p109
        $region46: #{bottleneck_forward.3} parent=43 // pred_check_branch
          %569 = sbr.rel (%p567) target = $region48
        $region47: #{bottleneck_forward.3} parent=43 // pred_region
          %p570 = scmp.lt.s32.totalorder %s18, 1
          %s571 = scalar_select %p570, %s18, 1
          %s572 = smul.addr %s571, 32
          %s573 = smul.addr %s572, 8
          %s574 = scalar_lea.vmem %s3, %s573
        $region48: #{bottleneck_forward.3} parent=43 // pred_fallthru
          _
      $region44: #{bottleneck_forward.3} parent=5 // pred_fallthru
        _
    $region6: #{bottleneck_forward.3} parent=1 // loop_footer
      %s16 = sadd.s32 1, %s12
    $region7: #{bottleneck_forward.3} parent=1 // loop_footer_branch
      %11 = sbr.rel target = $region3
    $region8: #{bottleneck_forward.3} parent=1 // loop_exit
      _
    %575 = vsyncpa [#allocation3], 1
    %s576 = scalar_lea.sflag [#allocation3], 1
    %577 = vsyncpa %s576, 1

// kernel: bottleneck_forward.4
$region0: #{bottleneck_forward.4}
  #allocation0 [shape = 'u32[]', space=smem, size = 0x4, offset = 0x4, fixed_abs, tag = 'smem constant byte address 0x4 - core index']
  #allocation1 [shape = 'u32[144,128]{1,0:T(1,128)}', space=vmem, size = 0x12000, scoped, tag = 'internal scratch']
  %s0 = inlined_call_operand.vmem [shape: f32[2,64,64], index: 0, kind: input, shape index: {}]
  %s1 = inlined_call_operand.vmem [shape: bf16[64,128], index: 1, kind: input, shape index: {}]
  %s2 = inlined_call_operand.vmem [shape: f32[1,128], index: 2, kind: input, shape index: {}]
  %s3 = inlined_call_operand.vmem [shape: f32[2,64,128], index: 3, kind: output, shape index: {}]
  %s4 = sld [smem:[#allocation0]]
  $region45: #{bottleneck_forward.4} parent=0
    _
  %s6 = ssub.s32 1, %s4
  %s7 = scalar_select 0, %s6, %s4
  loop: start=0, step=1, limit=4
  $region2: #{bottleneck_forward.4} parent=0 // loop_pre_header
    _
  $region3: #{bottleneck_forward.4} parent=0 // loop_header
    %s9 = sphi 0, %s13
    %p10 = scmp.ge.s32.totalorder %s9, 4
    %s19 = sphi 0, %s21
    %s22 = sphi 0, %s19
    %s23 = sphi 0, %s22
    %s39 = sphi 0, %s23
    %s43 = sphi 0, %s43
    %s45 = sphi 0, %s43
    %s46 = sphi 0, %s45
    %s60 = sphi 0, %s46
    %s64 = sphi 0, %s64
    %s66 = sphi 0, %s64
    %s67 = sphi 0, %s66
    %s81 = sphi 0, %s67
    %s87 = sphi 0, %s89
    %s90 = sphi 0, %s87
    %s91 = sphi 0, %s90
    %s107 = sphi 0, %s91
  $region4: #{bottleneck_forward.4} parent=0 // loop_header_branch
    %12 = sbr.rel (%p10) target = $region8
  $region5: #{bottleneck_forward.4} parent=0 // loop_body
    %s14 = ssub.s32 %s9, 1
    %s15 = ssub.s32 %s9, 2
    %s16 = sadd.s32 %s9, 1
    %s17 = ssub.s32 %s9, %s16
    %p18 = scmp.eq.s32.totalorder %s17, 0
    %s20 = sadd.s32 %s19, 1
    %s21 = scalar_select %p18, %s19, %s20
    %p24 = pneg %p18
    %p25 = scmp.eq.s32.totalorder %s9, 1
    %p26 = por %p24, %p25
    %p27 = scmp.ne.s32.totalorder %s19, %s22
    %p28 = scmp.eq.s32.totalorder %s9, 0
    %p29 = por %p27, %p28
    %p30 = scmp.ne.s32.totalorder %s19, %s22
    %p31 = scmp.eq.s32.totalorder %s14, 1
    %p32 = por %p30, %p31
    %p33 = scmp.ne.s32.totalorder %s22, %s23
    %p34 = scmp.eq.s32.totalorder %s14, 0
    %p35 = por %p33, %p34
    %p36 = scmp.ne.s32.totalorder %s22, %s23
    %p37 = scmp.eq.s32.totalorder %s15, 1
    %p38 = por %p36, %p37
    %p40 = scmp.ne.s32.totalorder %s23, %s39
    %p41 = scmp.eq.s32.totalorder %s15, 0
    %p42 = por %p40, %p41
    %s44 = sadd.s32 %s43, 1
    %p47 = scmp.eq.s32.totalorder %s9, 1
    %p48 = scmp.ne.s32.totalorder %s43, %s45
    %p49 = scmp.eq.s32.totalorder %s9, 0
    %p50 = por %p48, %p49
    %p51 = scmp.ne.s32.totalorder %s43, %s45
    %p52 = scmp.eq.s32.totalorder %s14, 1
    %p53 = por %p51, %p52
    %p54 = scmp.ne.s32.totalorder %s45, %s46
    %p55 = scmp.eq.s32.totalorder %s14, 0
    %p56 = por %p54, %p55
    %p57 = scmp.ne.s32.totalorder %s45, %s46
    %p58 = scmp.eq.s32.totalorder %s15, 1
    %p59 = por %p57, %p58
    %p61 = scmp.ne.s32.totalorder %s46, %s60
    %p62 = scmp.eq.s32.totalorder %s15, 0
    %p63 = por %p61, %p62
    %s65 = sadd.s32 %s64, 1
    %p68 = scmp.eq.s32.totalorder %s9, 1
    %p69 = scmp.ne.s32.totalorder %s64, %s66
    %p70 = scmp.eq.s32.totalorder %s9, 0
    %p71 = por %p69, %p70
    %p72 = scmp.ne.s32.totalorder %s64, %s66
    %p73 = scmp.eq.s32.totalorder %s14, 1
    %p74 = por %p72, %p73
    %p75 = scmp.ne.s32.totalorder %s66, %s67
    %p76 = scmp.eq.s32.totalorder %s14, 0
    %p77 = por %p75, %p76
    %p78 = scmp.ne.s32.totalorder %s66, %s67
    %p79 = scmp.eq.s32.totalorder %s15, 1
    %p80 = por %p78, %p79
    %p82 = scmp.ne.s32.totalorder %s67, %s81
    %p83 = scmp.eq.s32.totalorder %s15, 0
    %p84 = por %p82, %p83
    %s85 = ssub.s32 %s9, %s16
    %p86 = scmp.eq.s32.totalorder %s85, 0
    %s88 = sadd.s32 %s87, 1
    %s89 = scalar_select %p86, %s87, %s88
    %p92 = pneg %p86
    %p93 = scmp.eq.s32.totalorder %s9, 1
    %p94 = por %p92, %p93
    %p95 = scmp.ne.s32.totalorder %s87, %s90
    %p96 = scmp.eq.s32.totalorder %s9, 0
    %p97 = por %p95, %p96
    %p98 = scmp.ne.s32.totalorder %s87, %s90
    %p99 = scmp.eq.s32.totalorder %s14, 1
    %p100 = por %p98, %p99
    %p101 = scmp.ne.s32.totalorder %s90, %s91
    %p102 = scmp.eq.s32.totalorder %s14, 0
    %p103 = por %p101, %p102
    %p104 = scmp.ne.s32.totalorder %s90, %s91
    %p105 = scmp.eq.s32.totalorder %s15, 1
    %p106 = por %p104, %p105
    %p108 = scmp.ne.s32.totalorder %s91, %s107
    %p109 = scmp.eq.s32.totalorder %s15, 0
    %p110 = por %p108, %p109
    %p111 = scmp.le.s32.totalorder 1, %s9
    %p112 = scmp.lt.s32.totalorder %s9, 3
    %p113 = pnand %p111, %p112
    %p114 = pneg %p113
    // Predicated region
    $region9: #{bottleneck_forward.4} parent=5 // pred_check
      _
    $region10: #{bottleneck_forward.4} parent=5 // pred_check_branch
      %116 = sbr.rel (%p113) target = $region12
    $region11: #{bottleneck_forward.4} parent=5 // pred_region
      %s117 = ssub.s32 %s9, 1
      // Predicated region
      $region13: #{bottleneck_forward.4} parent=11 // pred_check
        %p118 = pneg %p56
      $region14: #{bottleneck_forward.4} parent=11 // pred_check_branch
        %120 = sbr.rel (%p118) target = $region16
      $region15: #{bottleneck_forward.4} parent=11 // pred_region
        _
      $region16: #{bottleneck_forward.4} parent=11 // pred_fallthru
        _
      // Predicated region
      $region17: #{bottleneck_forward.4} parent=11 // pred_check
        %p121 = pneg %p77
      $region18: #{bottleneck_forward.4} parent=11 // pred_check_branch
        %123 = sbr.rel (%p121) target = $region20
      $region19: #{bottleneck_forward.4} parent=11 // pred_region
        _
      $region20: #{bottleneck_forward.4} parent=11 // pred_fallthru
        _
    $region12: #{bottleneck_forward.4} parent=5 // pred_fallthru
      _
    %p124 = scmp.lt.s32.totalorder %s9, 2
    // Predicated region
    $region21: #{bottleneck_forward.4} parent=5 // pred_check
      %p125 = pneg %p124
    $region22: #{bottleneck_forward.4} parent=5 // pred_check_branch
      %127 = sbr.rel (%p125) target = $region24
    $region23: #{bottleneck_forward.4} parent=5 // pred_region
      // Predicated region
      $region25: #{bottleneck_forward.4} parent=23 // pred_check
        %p128 = pneg %p29
      $region26: #{bottleneck_forward.4} parent=23 // pred_check_branch
        %130 = sbr.rel (%p128) target = $region28
      $region27: #{bottleneck_forward.4} parent=23 // pred_region
        %p131 = scmp.lt.s32.totalorder %s9, 1
        %s132 = scalar_select %p131, %s9, 1
        %s133 = smul.addr %s132, 8
        %s134 = smul.addr %s133, 8
        %s135 = scalar_lea.vmem %s0, %s134
      $region28: #{bottleneck_forward.4} parent=23 // pred_fallthru
        _
    $region24: #{bottleneck_forward.4} parent=5 // pred_fallthru
      _
    %p136 = scmp.le.s32.totalorder 1, %s9
    %p137 = scmp.lt.s32.totalorder %s9, 3
    %p138 = pnand %p136, %p137
    %p139 = pneg %p138
    // Predicated region
    $region29: #{bottleneck_forward.4} parent=5 // pred_check
      _
    $region30: #{bottleneck_forward.4} parent=5 // pred_check_branch
      %141 = sbr.rel (%p138) target = $region32
    $region31: #{bottleneck_forward.4} parent=5 // pred_region
      %s142 = ssub.s32 %s9, 1
      %p143 = scmp.lt.s32.totalorder %s14, 1
      %s144 = scalar_select %p143, %s14, 1
      %s145 = smul.addr %s144, 8
      %s146 = smul.addr %s145, 8
      %s147 = scalar_lea.vmem %s0, %s146
      %p148 = pneg %p35
      %p149 = pneg %p32
      %p150 = pneg %p56
      %p151 = pneg %p53
      %p152 = pneg %p77
      %p153 = pneg %p74
      %p154 = pneg %p103
      %p155 = pneg %p100
      %p156 = scmp.lt.s32.totalorder %s14, 1
      %s157 = scalar_select %p156, %s14, 1
      %s158 = smul.addr %s157, 8
      %s159 = smul.addr %s158, 8
      %s160 = scalar_lea.vmem %s3, %s159
      %p161 = scmp.lt.s32.totalorder %s14, 1
      %s162 = scalar_select %p161, %s14, 1
      %s163 = smul.addr %s162, 8
      %s164 = smul.addr %s163, 8
      %s165 = scalar_lea.vmem %s0, %s164
      %p166 = scmp.lt.s32.totalorder %s14, 1
      %s167 = scalar_select %p166, %s14, 1
      %s168 = smul.addr %s167, 8
      %s169 = smul.addr %s168, 8
      %s170 = scalar_lea.vmem %s3, %s169
      %v172 = vld [vmem:[%s165] sm:$0xff]
      %v173 = vld [vmem:[%s165 + $0x8] sm:$0xff]
      %v174 = vld [vmem:[%s165 + $0x10] sm:$0xff]
      %v175 = vld [vmem:[%s165 + $0x18] sm:$0xff]
      %v176 = vld [vmem:[%s165 + $0x20] sm:$0xff]
      %v177 = vld [vmem:[%s165 + $0x28] sm:$0xff]
      %v178 = vld [vmem:[%s165 + $0x30] sm:$0xff]
      %v179 = vld [vmem:[%s165 + $0x38] sm:$0xff]
      %v180 = vpack.c.bf16 %v173, %v172
      %v181 = vpack.c.bf16 %v175, %v174
      %v182 = vpack.c.bf16 %v177, %v176
      %v183 = vpack.c.bf16 %v179, %v178
      %v184 = vld [vmem:[%s1] sm:$0xf]
      %v185 = vld [vmem:[%s1 + $0x4] sm:$0xf]
      %v186 = vld [vmem:[%s1 + $0x8] sm:$0xf]
      %v187 = vld [vmem:[%s1 + $0xc] sm:$0xf]
      %v188 = vld [vmem:[%s1 + $0x10] sm:$0xf]
      %v189 = vld [vmem:[%s1 + $0x14] sm:$0xf]
      %v190 = vld [vmem:[%s1 + $0x18] sm:$0xf]
      %v191 = vld [vmem:[%s1 + $0x1c] sm:$0xf]
      %v192 = vld [vmem:[%s2] sm:$0x1]
      %v194 = vlaneseq
      %v195 = vshrl.u32 %v194, 7
      %v196 = vsub.s32 0, %v195
      %v197 = vrot.slane %v192, %v196
      %v207 = vunpack.c.l.b16 %v184
      %v208 = vunpack.c.l.b16 %v185
      %v209 = vunpack.c.l.b16 %v186
      %v210 = vunpack.c.l.b16 %v187
      %v211 = vunpack.c.l.b16 %v188
      %v212 = vunpack.c.l.b16 %v189
      %v213 = vunpack.c.l.b16 %v190
      %v214 = vunpack.c.l.b16 %v191
      %v215 = vpack.c.b16 %v208, %v207
      %v216 = vpack.c.b16 %v210, %v209
      %v217 = vpack.c.b16 %v212, %v211
      %v218 = vpack.c.b16 %v214, %v213
      %vm223 = vcmask 523264
      %v225 = vsel %vm223, %v180, 0
      %v228 = vsel %vm223, %v181, 0
      %v231 = vsel %vm223, %v182, 0
      %v234 = vsel %vm223, %v183, 0
      %236 = vmatprep.subr.bf16.mxu0 0
      %237 = vmatpush1.bf16.msra.mxu0 %v215
      %238 = vmatprep.subr.bf16.mxu0 0
      %239 = vmatpush1.bf16.msra.mxu0 %v216
      %240 = vmatprep.subr.bf16.mxu0 0
      %241 = vmatpush1.bf16.msra.mxu0 %v217
      %242 = vmatprep.subr.bf16.mxu0 0
      %243 = vmatpush1.bf16.msra.mxu0 %v218
      %244 = vmatprep.subr.bf16.mxu0 0
      %245 = vmatpush1.bf16.msra.mxu0 0
      %246 = vmatprep.subr.bf16.mxu0 0
      %247 = vmatpush1.bf16.msra.mxu0 0
      %248 = vmatprep.subr.bf16.mxu0 0
      %249 = vmatpush1.bf16.msra.mxu0 0
      %250 = vmatprep.subr.bf16.mxu0 0
      %251 = vmatpush1.bf16.msra.mxu0 0
      %252 = vmatprep.subr.bf16.mxu0 0
      %253 = vmatpush1.bf16.msra.mxu0 0
      %254 = vmatprep.subr.bf16.mxu0 0
      %255 = vmatpush1.bf16.msra.mxu0 0
      %256 = vmatprep.subr.bf16.mxu0 0
      %257 = vmatpush1.bf16.msra.mxu0 0
      %258 = vmatprep.subr.bf16.mxu0 0
      %259 = vmatpush1.bf16.msra.mxu0 0
      %260 = vmatprep.subr.bf16.mxu0 0
      %261 = vmatpush1.bf16.msra.mxu0 0
      %262 = vmatprep.subr.bf16.mxu0 0
      %263 = vmatpush1.bf16.msra.mxu0 0
      %264 = vmatprep.subr.bf16.mxu0 0
      %265 = vmatpush1.bf16.msra.mxu0 0
      %266 = vmatprep.subr.bf16.mxu0 0
      %267 = vmatpush1.bf16.msra.mxu0 0
      %268 = vmatprep.mubr.bf16.mxu0 0
      %269 = vmatmul.mubr.bf16.gmra.mrb[0].mxu0 %v225
      %v270 = vpop.f32.mrb[0].mxu0
      %v271 = vadd.f32 %v197, %v270
      %v272 = vpop.f32.mrb[0].mxu0
      %v273 = vpop.f32.mrb[0].mxu0
      %v274 = vadd.f32 %v197, %v273
      %v275 = vpop.f32.mrb[0].mxu0
      %276 = vmatprep.mubr.bf16.mxu0 0
      %277 = vmatmul.mubr.bf16.gmra.mrb[0].mxu0 %v228
      %v278 = vpop.f32.mrb[0].mxu0
      %v279 = vadd.f32 %v197, %v278
      %v280 = vpop.f32.mrb[0].mxu0
      %v281 = vpop.f32.mrb[0].mxu0
      %v282 = vadd.f32 %v197, %v281
      %v283 = vpop.f32.mrb[0].mxu0
      %284 = vmatprep.mubr.bf16.mxu0 0
      %285 = vmatmul.mubr.bf16.gmra.mrb[0].mxu0 %v231
      %v286 = vpop.f32.mrb[0].mxu0
      %v287 = vadd.f32 %v197, %v286
      %v288 = vpop.f32.mrb[0].mxu0
      %v289 = vpop.f32.mrb[0].mxu0
      %v290 = vadd.f32 %v197, %v289
      %v291 = vpop.f32.mrb[0].mxu0
      %292 = vmatprep.mubr.bf16.mxu0 0
      %293 = vmatmul.mubr.bf16.gmra.mrb[0].mxu0 %v234
      %v294 = vpop.f32.mrb[0].mxu0
      %v295 = vadd.f32 %v197, %v294
      %v296 = vpop.f32.mrb[0].mxu0
      %v297 = vpop.f32.mrb[0].mxu0
      %v298 = vadd.f32 %v197, %v297
      %v299 = vpop.f32.mrb[0].mxu0
      %300 = vdwg.mxu0
      %301 = vst [vmem:[%s170] sm:$0xff] %v271
      %302 = vst [vmem:[%s170 + $0x8] sm:$0xff] %v274
      %303 = vst [vmem:[%s170 + $0x10] sm:$0xff] %v279
      %304 = vst [vmem:[%s170 + $0x18] sm:$0xff] %v282
      %305 = vst [vmem:[%s170 + $0x20] sm:$0xff] %v287
      %306 = vst [vmem:[%s170 + $0x28] sm:$0xff] %v290
      %307 = vst [vmem:[%s170 + $0x30] sm:$0xff] %v295
      %308 = vst [vmem:[%s170 + $0x38] sm:$0xff] %v298
      %p309 = scmp.lt.s32.totalorder %s14, 1
      %s310 = scalar_select %p309, %s14, 1
      %s311 = smul.addr %s310, 8
      %s312 = smul.addr %s311, 8
      %s313 = scalar_lea.vmem %s3, %s312
      // Predicated region
      $region33: #{bottleneck_forward.4} parent=31 // pred_check
        %p314 = pneg %p100
      $region34: #{bottleneck_forward.4} parent=31 // pred_check_branch
        %316 = sbr.rel (%p314) target = $region36
      $region35: #{bottleneck_forward.4} parent=31 // pred_region
        _
      $region36: #{bottleneck_forward.4} parent=31 // pred_fallthru
        _
    $region32: #{bottleneck_forward.4} parent=5 // pred_fallthru
      _
    %p317 = scmp.le.s32.totalorder 2, %s9
    // Predicated region
    $region37: #{bottleneck_forward.4} parent=5 // pred_check
      %p318 = pneg %p317
    $region38: #{bottleneck_forward.4} parent=5 // pred_check_branch
      %320 = sbr.rel (%p318) target = $region40
    $region39: #{bottleneck_forward.4} parent=5 // pred_region
      %s321 = ssub.s32 %s9, 2
      // Predicated region
      $region41: #{bottleneck_forward.4} parent=39 // pred_check
        %p322 = pneg %p106
      $region42: #{bottleneck_forward.4} parent=39 // pred_check_branch
        %324 = sbr.rel (%p322) target = $region44
      $region43: #{bottleneck_forward.4} parent=39 // pred_region
        %p325 = scmp.lt.s32.totalorder %s15, 1
        %s326 = scalar_select %p325, %s15, 1
        %s327 = smul.addr %s326, 8
        %s328 = smul.addr %s327, 8
        %s329 = scalar_lea.vmem %s3, %s328
      $region44: #{bottleneck_forward.4} parent=39 // pred_fallthru
        _
    $region40: #{bottleneck_forward.4} parent=5 // pred_fallthru
      _
  $region6: #{bottleneck_forward.4} parent=0 // loop_footer
    %s13 = sadd.s32 1, %s9
  $region7: #{bottleneck_forward.4} parent=0 // loop_footer_branch
    %8 = sbr.rel target = $region3
  $region8: #{bottleneck_forward.4} parent=0 // loop_exit
    _

// kernel: bottleneck_forward.5
$region0: #{bottleneck_forward.5}
  #allocation0 [shape = 'u32[]', space=smem, size = 0x4, offset = 0x4, fixed_abs, tag = 'smem constant byte address 0x4 - core index']
  #allocation1 [shape = 'u32[144,128]{1,0:T(1,128)}', space=vmem, size = 0x12000, scoped, tag = 'internal scratch']
  %s0 = inlined_call_operand.vmem [shape: f32[2,4,9,9,32], index: 0, kind: input, shape index: {}]
  %s1 = inlined_call_operand.vmem [shape: bf16[9,32,32], index: 1, kind: input, shape index: {}]
  %s2 = inlined_call_operand.vmem [shape: f32[1,32], index: 2, kind: input, shape index: {}]
  %s3 = inlined_call_operand.vmem [shape: bf16[32,128], index: 3, kind: input, shape index: {}]
  %s4 = inlined_call_operand.vmem [shape: f32[1,128], index: 4, kind: input, shape index: {}]
  %s5 = inlined_call_operand.vmem [shape: f32[2,64,128], index: 5, kind: input, shape index: {}]
  %s6 = inlined_call_operand.hbm [shape: f32[2,64,128], index: 6, kind: output, shape index: {}]
  %s7 = sld [smem:[#allocation0]]
  $region57: #{bottleneck_forward.5} parent=0
    _
  %s9 = ssub.s32 1, %s7
  %s10 = scalar_select 0, %s9, %s7
  $region1: #{bottleneck_forward.5} parent=0
    #allocation2 [shape = 'u8[65536]{0}', space=vmem, size = 0x10000, scoped, tag = 'output window, operand 0']
    #allocation3 [shape = 's32[2]{0}', space=sflag, size = 0x8, scoped, tag = 'scoped memory for bottleneck_forward.5']
    %11 = vsyncpa [#allocation3], 0
    %s12 = scalar_lea.sflag [#allocation3], 1
    %13 = vsyncpa %s12, 0
    loop: start=0, step=1, limit=4
    $region2: #{bottleneck_forward.5} parent=1 // loop_pre_header
      _
    $region3: #{bottleneck_forward.5} parent=1 // loop_header
      %s15 = sphi 0, %s19
      %p16 = scmp.ge.s32.totalorder %s15, 4
      %s25 = sphi 0, %s27
      %s28 = sphi 0, %s25
      %s29 = sphi 0, %s28
      %s45 = sphi 0, %s29
      %s49 = sphi 0, %s49
      %s51 = sphi 0, %s49
      %s52 = sphi 0, %s51
      %s66 = sphi 0, %s52
      %s70 = sphi 0, %s70
      %s72 = sphi 0, %s70
      %s73 = sphi 0, %s72
      %s87 = sphi 0, %s73
      %s91 = sphi 0, %s91
      %s93 = sphi 0, %s91
      %s94 = sphi 0, %s93
      %s108 = sphi 0, %s94
      %s112 = sphi 0, %s112
      %s114 = sphi 0, %s112
      %s115 = sphi 0, %s114
      %s129 = sphi 0, %s115
      %s135 = sphi 0, %s137
      %s138 = sphi 0, %s135
      %s139 = sphi 0, %s138
      %s155 = sphi 0, %s139
      %s161 = sphi 0, %s163
      %s164 = sphi 0, %s161
      %s165 = sphi 0, %s164
      %s181 = sphi 0, %s165
    $region4: #{bottleneck_forward.5} parent=1 // loop_header_branch
      %18 = sbr.rel (%p16) target = $region8
    $region5: #{bottleneck_forward.5} parent=1 // loop_body
      %s20 = ssub.s32 %s15, 1
      %s21 = ssub.s32 %s15, 2
      %s22 = sadd.s32 %s15, 1
      %s23 = ssub.s32 %s15, %s22
      %p24 = scmp.eq.s32.totalorder %s23, 0
      %s26 = sadd.s32 %s25, 1
      %s27 = scalar_select %p24, %s25, %s26
      %p30 = pneg %p24
      %p31 = scmp.eq.s32.totalorder %s15, 1
      %p32 = por %p30, %p31
      %p33 = scmp.ne.s32.totalorder %s25, %s28
      %p34 = scmp.eq.s32.totalorder %s15, 0
      %p35 = por %p33, %p34
      %p36 = scmp.ne.s32.totalorder %s25, %s28
      %p37 = scmp.eq.s32.totalorder %s20, 1
      %p38 = por %p36, %p37
      %p39 = scmp.ne.s32.totalorder %s28, %s29
      %p40 = scmp.eq.s32.totalorder %s20, 0
      %p41 = por %p39, %p40
      %p42 = scmp.ne.s32.totalorder %s28, %s29
      %p43 = scmp.eq.s32.totalorder %s21, 1
      %p44 = por %p42, %p43
      %p46 = scmp.ne.s32.totalorder %s29, %s45
      %p47 = scmp.eq.s32.totalorder %s21, 0
      %p48 = por %p46, %p47
      %s50 = sadd.s32 %s49, 1
      %p53 = scmp.eq.s32.totalorder %s15, 1
      %p54 = scmp.ne.s32.totalorder %s49, %s51
      %p55 = scmp.eq.s32.totalorder %s15, 0
      %p56 = por %p54, %p55
      %p57 = scmp.ne.s32.totalorder %s49, %s51
      %p58 = scmp.eq.s32.totalorder %s20, 1
      %p59 = por %p57, %p58
      %p60 = scmp.ne.s32.totalorder %s51, %s52
      %p61 = scmp.eq.s32.totalorder %s20, 0
      %p62 = por %p60, %p61
      %p63 = scmp.ne.s32.totalorder %s51, %s52
      %p64 = scmp.eq.s32.totalorder %s21, 1
      %p65 = por %p63, %p64
      %p67 = scmp.ne.s32.totalorder %s52, %s66
      %p68 = scmp.eq.s32.totalorder %s21, 0
      %p69 = por %p67, %p68
      %s71 = sadd.s32 %s70, 1
      %p74 = scmp.eq.s32.totalorder %s15, 1
      %p75 = scmp.ne.s32.totalorder %s70, %s72
      %p76 = scmp.eq.s32.totalorder %s15, 0
      %p77 = por %p75, %p76
      %p78 = scmp.ne.s32.totalorder %s70, %s72
      %p79 = scmp.eq.s32.totalorder %s20, 1
      %p80 = por %p78, %p79
      %p81 = scmp.ne.s32.totalorder %s72, %s73
      %p82 = scmp.eq.s32.totalorder %s20, 0
      %p83 = por %p81, %p82
      %p84 = scmp.ne.s32.totalorder %s72, %s73
      %p85 = scmp.eq.s32.totalorder %s21, 1
      %p86 = por %p84, %p85
      %p88 = scmp.ne.s32.totalorder %s73, %s87
      %p89 = scmp.eq.s32.totalorder %s21, 0
      %p90 = por %p88, %p89
      %s92 = sadd.s32 %s91, 1
      %p95 = scmp.eq.s32.totalorder %s15, 1
      %p96 = scmp.ne.s32.totalorder %s91, %s93
      %p97 = scmp.eq.s32.totalorder %s15, 0
      %p98 = por %p96, %p97
      %p99 = scmp.ne.s32.totalorder %s91, %s93
      %p100 = scmp.eq.s32.totalorder %s20, 1
      %p101 = por %p99, %p100
      %p102 = scmp.ne.s32.totalorder %s93, %s94
      %p103 = scmp.eq.s32.totalorder %s20, 0
      %p104 = por %p102, %p103
      %p105 = scmp.ne.s32.totalorder %s93, %s94
      %p106 = scmp.eq.s32.totalorder %s21, 1
      %p107 = por %p105, %p106
      %p109 = scmp.ne.s32.totalorder %s94, %s108
      %p110 = scmp.eq.s32.totalorder %s21, 0
      %p111 = por %p109, %p110
      %s113 = sadd.s32 %s112, 1
      %p116 = scmp.eq.s32.totalorder %s15, 1
      %p117 = scmp.ne.s32.totalorder %s112, %s114
      %p118 = scmp.eq.s32.totalorder %s15, 0
      %p119 = por %p117, %p118
      %p120 = scmp.ne.s32.totalorder %s112, %s114
      %p121 = scmp.eq.s32.totalorder %s20, 1
      %p122 = por %p120, %p121
      %p123 = scmp.ne.s32.totalorder %s114, %s115
      %p124 = scmp.eq.s32.totalorder %s20, 0
      %p125 = por %p123, %p124
      %p126 = scmp.ne.s32.totalorder %s114, %s115
      %p127 = scmp.eq.s32.totalorder %s21, 1
      %p128 = por %p126, %p127
      %p130 = scmp.ne.s32.totalorder %s115, %s129
      %p131 = scmp.eq.s32.totalorder %s21, 0
      %p132 = por %p130, %p131
      %s133 = ssub.s32 %s15, %s22
      %p134 = scmp.eq.s32.totalorder %s133, 0
      %s136 = sadd.s32 %s135, 1
      %s137 = scalar_select %p134, %s135, %s136
      %p140 = pneg %p134
      %p141 = scmp.eq.s32.totalorder %s15, 1
      %p142 = por %p140, %p141
      %p143 = scmp.ne.s32.totalorder %s135, %s138
      %p144 = scmp.eq.s32.totalorder %s15, 0
      %p145 = por %p143, %p144
      %p146 = scmp.ne.s32.totalorder %s135, %s138
      %p147 = scmp.eq.s32.totalorder %s20, 1
      %p148 = por %p146, %p147
      %p149 = scmp.ne.s32.totalorder %s138, %s139
      %p150 = scmp.eq.s32.totalorder %s20, 0
      %p151 = por %p149, %p150
      %p152 = scmp.ne.s32.totalorder %s138, %s139
      %p153 = scmp.eq.s32.totalorder %s21, 1
      %p154 = por %p152, %p153
      %p156 = scmp.ne.s32.totalorder %s139, %s155
      %p157 = scmp.eq.s32.totalorder %s21, 0
      %p158 = por %p156, %p157
      %s159 = ssub.s32 %s15, %s22
      %p160 = scmp.eq.s32.totalorder %s159, 0
      %s162 = sadd.s32 %s161, 1
      %s163 = scalar_select %p160, %s161, %s162
      %p166 = pneg %p160
      %p167 = scmp.eq.s32.totalorder %s15, 1
      %p168 = por %p166, %p167
      %p169 = scmp.ne.s32.totalorder %s161, %s164
      %p170 = scmp.eq.s32.totalorder %s15, 0
      %p171 = por %p169, %p170
      %p172 = scmp.ne.s32.totalorder %s161, %s164
      %p173 = scmp.eq.s32.totalorder %s20, 1
      %p174 = por %p172, %p173
      %p175 = scmp.ne.s32.totalorder %s164, %s165
      %p176 = scmp.eq.s32.totalorder %s20, 0
      %p177 = por %p175, %p176
      %p178 = scmp.ne.s32.totalorder %s164, %s165
      %p179 = scmp.eq.s32.totalorder %s21, 1
      %p180 = por %p178, %p179
      %p182 = scmp.ne.s32.totalorder %s165, %s181
      %p183 = scmp.eq.s32.totalorder %s21, 0
      %p184 = por %p182, %p183
      %p185 = scmp.le.s32.totalorder 1, %s15
      %p186 = scmp.lt.s32.totalorder %s15, 3
      %p187 = pnand %p185, %p186
      %p188 = pneg %p187
      // Predicated region
      $region9: #{bottleneck_forward.5} parent=5 // pred_check
        _
      $region10: #{bottleneck_forward.5} parent=5 // pred_check_branch
        %190 = sbr.rel (%p187) target = $region12
      $region11: #{bottleneck_forward.5} parent=5 // pred_region
        %s191 = ssub.s32 %s15, 1
        // Predicated region
        $region13: #{bottleneck_forward.5} parent=11 // pred_check
          %p192 = pneg %p62
        $region14: #{bottleneck_forward.5} parent=11 // pred_check_branch
          %194 = sbr.rel (%p192) target = $region16
        $region15: #{bottleneck_forward.5} parent=11 // pred_region
          _
        $region16: #{bottleneck_forward.5} parent=11 // pred_fallthru
          _
        // Predicated region
        $region17: #{bottleneck_forward.5} parent=11 // pred_check
          %p195 = pneg %p83
        $region18: #{bottleneck_forward.5} parent=11 // pred_check_branch
          %197 = sbr.rel (%p195) target = $region20
        $region19: #{bottleneck_forward.5} parent=11 // pred_region
          _
        $region20: #{bottleneck_forward.5} parent=11 // pred_fallthru
          _
        // Predicated region
        $region21: #{bottleneck_forward.5} parent=11 // pred_check
          %p198 = pneg %p104
        $region22: #{bottleneck_forward.5} parent=11 // pred_check_branch
          %200 = sbr.rel (%p198) target = $region24
        $region23: #{bottleneck_forward.5} parent=11 // pred_region
          _
        $region24: #{bottleneck_forward.5} parent=11 // pred_fallthru
          _
        // Predicated region
        $region25: #{bottleneck_forward.5} parent=11 // pred_check
          %p201 = pneg %p125
        $region26: #{bottleneck_forward.5} parent=11 // pred_check_branch
          %203 = sbr.rel (%p201) target = $region28
        $region27: #{bottleneck_forward.5} parent=11 // pred_region
          _
        $region28: #{bottleneck_forward.5} parent=11 // pred_fallthru
          _
      $region12: #{bottleneck_forward.5} parent=5 // pred_fallthru
        _
      %p204 = scmp.lt.s32.totalorder %s15, 2
      // Predicated region
      $region29: #{bottleneck_forward.5} parent=5 // pred_check
        %p205 = pneg %p204
      $region30: #{bottleneck_forward.5} parent=5 // pred_check_branch
        %207 = sbr.rel (%p205) target = $region32
      $region31: #{bottleneck_forward.5} parent=5 // pred_region
        // Predicated region
        $region33: #{bottleneck_forward.5} parent=31 // pred_check
          %p208 = pneg %p35
        $region34: #{bottleneck_forward.5} parent=31 // pred_check_branch
          %210 = sbr.rel (%p208) target = $region36
        $region35: #{bottleneck_forward.5} parent=31 // pred_region
          %p211 = scmp.lt.s32.totalorder %s15, 1
          %s212 = scalar_select %p211, %s15, 1
          %s213 = smul.addr %s212, 72
          %s214 = smul.addr %s213, 8
          %s215 = scalar_lea.vmem %s0, %s214
        $region36: #{bottleneck_forward.5} parent=31 // pred_fallthru
          _
        // Predicated region
        $region37: #{bottleneck_forward.5} parent=31 // pred_check
          %p216 = pneg %p145
        $region38: #{bottleneck_forward.5} parent=31 // pred_check_branch
          %218 = sbr.rel (%p216) target = $region40
        $region39: #{bottleneck_forward.5} parent=31 // pred_region
          %p219 = scmp.lt.s32.totalorder %s15, 1
          %s220 = scalar_select %p219, %s15, 1
          %s221 = smul.addr %s220, 8
          %s222 = smul.addr %s221, 8
          %s223 = scalar_lea.vmem %s5, %s222
        $region40: #{bottleneck_forward.5} parent=31 // pred_fallthru
          _
      $region32: #{bottleneck_forward.5} parent=5 // pred_fallthru
        _
      %p224 = scmp.le.s32.totalorder 1, %s15
      %p225 = scmp.lt.s32.totalorder %s15, 3
      %p226 = pnand %p224, %p225
      %p227 = pneg %p226
      // Predicated region
      $region41: #{bottleneck_forward.5} parent=5 // pred_check
        _
      $region42: #{bottleneck_forward.5} parent=5 // pred_check_branch
        %229 = sbr.rel (%p226) target = $region44
      $region43: #{bottleneck_forward.5} parent=5 // pred_region
        %s230 = ssub.s32 %s15, 1
        %p231 = scmp.lt.s32.totalorder %s20, 1
        %s232 = scalar_select %p231, %s20, 1
        %s233 = smul.addr %s232, 72
        %s234 = smul.addr %s233, 8
        %s235 = scalar_lea.vmem %s0, %s234
        %p236 = pneg %p41
        %p237 = pneg %p38
        %p238 = pneg %p62
        %p239 = pneg %p59
        %p240 = pneg %p83
        %p241 = pneg %p80
        %p242 = pneg %p104
        %p243 = pneg %p101
        %p244 = pneg %p125
        %p245 = pneg %p122
        %p246 = scmp.lt.s32.totalorder %s20, 1
        %s247 = scalar_select %p246, %s20, 1
        %s248 = smul.addr %s247, 8
        %s249 = smul.addr %s248, 8
        %s250 = scalar_lea.vmem %s5, %s249
        %p251 = pneg %p151
        %p252 = pneg %p148
        %p253 = pneg %p177
        %p254 = pneg %p174
        %s255 = sand.u32 %s164, 1
        %s256 = scalar_lea.sflag [#allocation3], %s255
        %s257 = sand.u32 %s164, 1
        %s258 = smul.addr %s257, 64
        %s259 = scalar_lea.vmem [#allocation2], %s258
        %p260 = scmp.lt.s32.totalorder %s20, 1
        %s261 = scalar_select %p260, %s20, 1
        %s262 = smul.addr %s261, 72
        %s263 = smul.addr %s262, 8
        %s264 = scalar_lea.vmem %s0, %s263
        %p265 = scmp.lt.s32.totalorder %s20, 1
        %s266 = scalar_select %p265, %s20, 1
        %s267 = smul.addr %s266, 8
        %s268 = smul.addr %s267, 8
        %s269 = scalar_lea.vmem %s5, %s268
        %v271 = vld [vmem:[%s264] sm:$0xff]
        %v272 = vld [vmem:[%s264 + $0x8] sm:$0x1]
        %v273 = vld [vmem:[%s264 + $0x10] sm:$0xff]
        %v274 = vld [vmem:[%s264 + $0x18] sm:$0x1]
        %v275 = vld [vmem:[%s264 + $0x20] sm:$0xff]
        %v276 = vld [vmem:[%s264 + $0x28] sm:$0x1]
        %v277 = vld [vmem:[%s264 + $0x30] sm:$0xff]
        %v278 = vld [vmem:[%s264 + $0x38] sm:$0x1]
        %v279 = vld [vmem:[%s264 + $0x40] sm:$0xff]
        %v280 = vld [vmem:[%s264 + $0x48] sm:$0x1]
        %v281 = vld [vmem:[%s264 + $0x50] sm:$0xff]
        %v282 = vld [vmem:[%s264 + $0x58] sm:$0x1]
        %v283 = vld [vmem:[%s264 + $0x60] sm:$0xff]
        %v284 = vld [vmem:[%s264 + $0x68] sm:$0x1]
        %v285 = vld [vmem:[%s264 + $0x70] sm:$0xff]
        %v286 = vld [vmem:[%s264 + $0x78] sm:$0x1]
        %v287 = vld [vmem:[%s264 + $0x80] sm:$0xff]
        %v288 = vld [vmem:[%s264 + $0x88] sm:$0x1]
        %v289 = vld [vmem:[%s264 + $0x90] sm:$0xff]
        %v290 = vld [vmem:[%s264 + $0xa0] sm:$0xff]
        %v291 = vld [vmem:[%s264 + $0xb0] sm:$0xff]
        %v292 = vld [vmem:[%s264 + $0xc0] sm:$0xff]
        %v293 = vld [vmem:[%s264 + $0xd0] sm:$0xff]
        %v294 = vld [vmem:[%s264 + $0xe0] sm:$0xff]
        %v295 = vld [vmem:[%s264 + $0xf0] sm:$0xff]
        %v296 = vld [vmem:[%s264 + $0x100] sm:$0xff]
        %v297 = vld [vmem:[%s264 + $0x110] sm:$0xff]
        %v298 = vld [vmem:[%s264 + $0x120] sm:$0xff]
        %v299 = vld [vmem:[%s264 + $0x128] sm:$0x1]
        %v300 = vld [vmem:[%s264 + $0x130] sm:$0xff]
        %v301 = vld [vmem:[%s264 + $0x138] sm:$0x1]
        %v302 = vld [vmem:[%s264 + $0x140] sm:$0xff]
        %v303 = vld [vmem:[%s264 + $0x148] sm:$0x1]
        %v304 = vld [vmem:[%s264 + $0x150] sm:$0xff]
        %v305 = vld [vmem:[%s264 + $0x158] sm:$0x1]
        %v306 = vld [vmem:[%s264 + $0x160] sm:$0xff]
        %v307 = vld [vmem:[%s264 + $0x168] sm:$0x1]
        %v308 = vld [vmem:[%s264 + $0x170] sm:$0xff]
        %v309 = vld [vmem:[%s264 + $0x178] sm:$0x1]
        %v310 = vld [vmem:[%s264 + $0x180] sm:$0xff]
        %v311 = vld [vmem:[%s264 + $0x188] sm:$0x1]
        %v312 = vld [vmem:[%s264 + $0x190] sm:$0xff]
        %v313 = vld [vmem:[%s264 + $0x198] sm:$0x1]
        %v314 = vld [vmem:[%s264 + $0x1b0] sm:$0xff]
        %v315 = vld [vmem:[%s264 + $0x1c0] sm:$0xff]
        %v316 = vld [vmem:[%s264 + $0x1d0] sm:$0xff]
        %v317 = vld [vmem:[%s264 + $0x1e0] sm:$0xff]
        %v318 = vld [vmem:[%s264 + $0x1f0] sm:$0xff]
        %v319 = vld [vmem:[%s264 + $0x200] sm:$0xff]
        %v320 = vld [vmem:[%s264 + $0x210] sm:$0xff]
        %v321 = vld [vmem:[%s264 + $0x220] sm:$0xff]
        %v322 = vpack.c.bf16 %v273, %v271
        %v323 = vpack.c.bf16 %v277, %v275
        %v324 = vpack.c.bf16 %v281, %v279
        %v325 = vpack.c.bf16 %v285, %v283
        %v326 = vld [vmem:[%s1] sm:$0xf]
        %v327 = vld [vmem:[%s1 + $0x4] sm:$0xf]
        %v328 = vld [vmem:[%s1 + $0x8] sm:$0xf]
        %v329 = vld [vmem:[%s1 + $0xc] sm:$0xf]
        %v330 = vpack.c.bf16 %v290, %v289
        %v331 = vpack.c.bf16 %v292, %v291
        %v332 = vpack.c.bf16 %v294, %v293
        %v333 = vpack.c.bf16 %v296, %v295
        %s334 = scalar_lea.vmem %s1, 16
        %v335 = vld [vmem:[%s334] sm:$0xf]
        %v336 = vld [vmem:[%s334 + $0x4] sm:$0xf]
        %v337 = vld [vmem:[%s334 + $0x8] sm:$0xf]
        %v338 = vld [vmem:[%s334 + $0xc] sm:$0xf]
        %v343 = vunpack.c.l.b16 %v335
        %v344 = vunpack.c.l.b16 %v336
        %v345 = vunpack.c.l.b16 %v337
        %v346 = vunpack.c.l.b16 %v338
        %v347 = vpack.c.b16 %v344, %v343
        %v348 = vpack.c.b16 %v346, %v345
        %vm351 = vcmask 261120
        %v353 = vsel %vm351, %v330, 0
        %v356 = vsel %vm351, %v331, 0
        %v359 = vsel %vm351, %v332, 0
        %v362 = vsel %vm351, %v333, 0
        %364 = vmatprep.subr.bf16.mxu0 0
        %365 = vmatpush1.bf16.msra.mxu0 %v347
        %366 = vmatprep.subr.bf16.mxu0 0
        %367 = vmatpush1.bf16.msra.mxu0 %v348
        %368 = vmatprep.subr.bf16.mxu0 0
        %369 = vmatpush1.bf16.msra.mxu0 0
        %370 = vmatprep.subr.bf16.mxu0 0
        %371 = vmatpush1.bf16.msra.mxu0 0
        %372 = vmatprep.subr.bf16.mxu0 0
        %373 = vmatpush1.bf16.msra.mxu0 0
        %374 = vmatprep.subr.bf16.mxu0 0
        %375 = vmatpush1.bf16.msra.mxu0 0
        %376 = vmatprep.subr.bf16.mxu0 0
        %377 = vmatpush1.bf16.msra.mxu0 0
        %378 = vmatprep.subr.bf16.mxu0 0
        %379 = vmatpush1.bf16.msra.mxu0 0
        %380 = vmatprep.subr.bf16.mxu0 0
        %381 = vmatpush1.bf16.msra.mxu0 0
        %382 = vmatprep.subr.bf16.mxu0 0
        %383 = vmatpush1.bf16.msra.mxu0 0
        %384 = vmatprep.subr.bf16.mxu0 0
        %385 = vmatpush1.bf16.msra.mxu0 0
        %386 = vmatprep.subr.bf16.mxu0 0
        %387 = vmatpush1.bf16.msra.mxu0 0
        %388 = vmatprep.subr.bf16.mxu0 0
        %389 = vmatpush1.bf16.msra.mxu0 0
        %390 = vmatprep.subr.bf16.mxu0 0
        %391 = vmatpush1.bf16.msra.mxu0 0
        %392 = vmatprep.subr.bf16.mxu0 0
        %393 = vmatpush1.bf16.msra.mxu0 0
        %394 = vmatprep.subr.bf16.mxu0 0
        %395 = vmatpush1.bf16.msra.mxu0 0
        %396 = vmatprep.mubr.bf16.mxu0 0
        %397 = vmatmul.mubr.bf16.gmra.mrb[0].mxu0 %v353
        %v398 = vpop.f32.mrb[0].mxu0
        %v399 = vadd.f32 0.0, %v398
        %v400 = vpop.f32.mrb[0].mxu0
        %v401 = vpop.f32.mrb[0].mxu0
        %v402 = vadd.f32 0.0, %v401
        %v403 = vpop.f32.mrb[0].mxu0
        %404 = vmatprep.mubr.bf16.mxu0 0
        %405 = vmatmul.mubr.bf16.gmra.mrb[0].mxu0 %v356
        %v406 = vpop.f32.mrb[0].mxu0
        %v407 = vadd.f32 0.0, %v406
        %v408 = vpop.f32.mrb[0].mxu0
        %v409 = vpop.f32.mrb[0].mxu0
        %v410 = vadd.f32 0.0, %v409
        %v411 = vpop.f32.mrb[0].mxu0
        %412 = vmatprep.mubr.bf16.mxu0 0
        %413 = vmatmul.mubr.bf16.gmra.mrb[0].mxu0 %v359
        %v414 = vpop.f32.mrb[0].mxu0
        %v415 = vadd.f32 0.0, %v414
        %v416 = vpop.f32.mrb[0].mxu0
        %v417 = vpop.f32.mrb[0].mxu0
        %v418 = vadd.f32 0.0, %v417
        %v419 = vpop.f32.mrb[0].mxu0
        %420 = vmatprep.mubr.bf16.mxu0 0
        %421 = vmatmul.mubr.bf16.gmra.mrb[0].mxu0 %v362
        %v422 = vpop.f32.mrb[0].mxu0
        %v423 = vadd.f32 0.0, %v422
        %v424 = vpop.f32.mrb[0].mxu0
        %v425 = vpop.f32.mrb[0].mxu0
        %v426 = vadd.f32 0.0, %v425
        %v427 = vpop.f32.mrb[0].mxu0
        %428 = vdwg.mxu0
        %v433 = vunpack.c.l.b16 %v326
        %v434 = vunpack.c.l.b16 %v327
        %v435 = vunpack.c.l.b16 %v328
        %v436 = vunpack.c.l.b16 %v329
        %v437 = vpack.c.b16 %v434, %v433
        %v438 = vpack.c.b16 %v436, %v435
        %v442 = vsel %vm351, %v322, 0
        %v445 = vsel %vm351, %v323, 0
        %v448 = vsel %vm351, %v324, 0
        %v451 = vsel %vm351, %v325, 0
        %453 = vmatprep.subr.bf16.mxu0 0
        %454 = vmatpush1.bf16.msra.mxu0 %v437
        %455 = vmatprep.subr.bf16.mxu0 0
        %456 = vmatpush1.bf16.msra.mxu0 %v438
        %457 = vmatprep.subr.bf16.mxu0 0
        %458 = vmatpush1.bf16.msra.mxu0 0
        %459 = vmatprep.subr.bf16.mxu0 0
        %460 = vmatpush1.bf16.msra.mxu0 0
        %461 = vmatprep.subr.bf16.mxu0 0
        %462 = vmatpush1.bf16.msra.mxu0 0
        %463 = vmatprep.subr.bf16.mxu0 0
        %464 = vmatpush1.bf16.msra.mxu0 0
        %465 = vmatprep.subr.bf16.mxu0 0
        %466 = vmatpush1.bf16.msra.mxu0 0
        %467 = vmatprep.subr.bf16.mxu0 0
        %468 = vmatpush1.bf16.msra.mxu0 0
        %469 = vmatprep.subr.bf16.mxu0 0
        %470 = vmatpush1.bf16.msra.mxu0 0
        %471 = vmatprep.subr.bf16.mxu0 0
        %472 = vmatpush1.bf16.msra.mxu0 0
        %473 = vmatprep.subr.bf16.mxu0 0
        %474 = vmatpush1.bf16.msra.mxu0 0
        %475 = vmatprep.subr.bf16.mxu0 0
        %476 = vmatpush1.bf16.msra.mxu0 0
        %477 = vmatprep.subr.bf16.mxu0 0
        %478 = vmatpush1.bf16.msra.mxu0 0
        %479 = vmatprep.subr.bf16.mxu0 0
        %480 = vmatpush1.bf16.msra.mxu0 0
        %481 = vmatprep.subr.bf16.mxu0 0
        %482 = vmatpush1.bf16.msra.mxu0 0
        %483 = vmatprep.subr.bf16.mxu0 0
        %484 = vmatpush1.bf16.msra.mxu0 0
        %485 = vmatprep.mubr.bf16.mxu0 0
        %486 = vmatmul.mubr.bf16.gmra.mrb[0].mxu0 %v442
        %v487 = vpop.f32.mrb[0].mxu0
        %v488 = vadd.f32 %v399, %v487
        %v489 = vpop.f32.mrb[0].mxu0
        %v490 = vpop.f32.mrb[0].mxu0
        %v491 = vadd.f32 %v402, %v490
        %v492 = vpop.f32.mrb[0].mxu0
        %493 = vmatprep.mubr.bf16.mxu0 0
        %494 = vmatmul.mubr.bf16.gmra.mrb[0].mxu0 %v445
        %v495 = vpop.f32.mrb[0].mxu0
        %v496 = vadd.f32 %v407, %v495
        %v497 = vpop.f32.mrb[0].mxu0
        %v498 = vpop.f32.mrb[0].mxu0
        %v499 = vadd.f32 %v410, %v498
        %v500 = vpop.f32.mrb[0].mxu0
        %501 = vmatprep.mubr.bf16.mxu0 0
        %502 = vmatmul.mubr.bf16.gmra.mrb[0].mxu0 %v448
        %v503 = vpop.f32.mrb[0].mxu0
        %v504 = vadd.f32 %v415, %v503
        %v505 = vpop.f32.mrb[0].mxu0
        %v506 = vpop.f32.mrb[0].mxu0
        %v507 = vadd.f32 %v418, %v506
        %v508 = vpop.f32.mrb[0].mxu0
        %509 = vmatprep.mubr.bf16.mxu0 0
        %510 = vmatmul.mubr.bf16.gmra.mrb[0].mxu0 %v451
        %v511 = vpop.f32.mrb[0].mxu0
        %v512 = vadd.f32 %v423, %v511
        %v513 = vpop.f32.mrb[0].mxu0
        %v514 = vpop.f32.mrb[0].mxu0
        %v515 = vadd.f32 %v426, %v514
        %v516 = vpop.f32.mrb[0].mxu0
        %517 = vdwg.mxu0
        %vm534 = vcmask 1046528
        %v535 = vrot.slane %v271, 1
        %v536 = vrot.slane %v272, 1
        %v537 = vsel %vm534, %v535, %v536
        %v538 = vrot.slane %v273, 1
        %v539 = vrot.slane %v274, 1
        %v540 = vsel %vm534, %v538, %v539
        %v541 = vrot.slane %v275, 1
        %v542 = vrot.slane %v276, 1
        %v543 = vsel %vm534, %v541, %v542
        %v544 = vrot.slane %v277, 1
        %v545 = vrot.slane %v278, 1
        %v546 = vsel %vm534, %v544, %v545
        %v547 = vrot.slane %v279, 1
        %v548 = vrot.slane %v280, 1
        %v549 = vsel %vm534, %v547, %v548
        %v550 = vrot.slane %v281, 1
        %v551 = vrot.slane %v282, 1
        %v552 = vsel %vm534, %v550, %v551
        %v553 = vrot.slane %v283, 1
        %v554 = vrot.slane %v284, 1
        %v555 = vsel %vm534, %v553, %v554
        %v556 = vrot.slane %v285, 1
        %v557 = vrot.slane %v286, 1
        %v558 = vsel %vm534, %v556, %v557
        %v567 = vpack.c.bf16 %v540, %v537
        %v568 = vpack.c.bf16 %v546, %v543
        %v569 = vpack.c.bf16 %v552, %v549
        %v570 = vpack.c.bf16 %v558, %v555
        %s571 = scalar_lea.vmem %s1, 32
        %v572 = vld [vmem:[%s571] sm:$0xf]
        %v573 = vld [vmem:[%s571 + $0x4] sm:$0xf]
        %v574 = vld [vmem:[%s571 + $0x8] sm:$0xf]
        %v575 = vld [vmem:[%s571 + $0xc] sm:$0xf]
        %v580 = vunpack.c.l.b16 %v572
        %v581 = vunpack.c.l.b16 %v573
        %v582 = vunpack.c.l.b16 %v574
        %v583 = vunpack.c.l.b16 %v575
        %v584 = vpack.c.b16 %v581, %v580
        %v585 = vpack.c.b16 %v583, %v582
        %v589 = vsel %vm351, %v567, 0
        %v592 = vsel %vm351, %v568, 0
        %v595 = vsel %vm351, %v569, 0
        %v598 = vsel %vm351, %v570, 0
        %600 = vmatprep.subr.bf16.mxu0 0
        %601 = vmatpush1.bf16.msra.mxu0 %v584
        %602 = vmatprep.subr.bf16.mxu0 0
        %603 = vmatpush1.bf16.msra.mxu0 %v585
        %604 = vmatprep.subr.bf16.mxu0 0
        %605 = vmatpush1.bf16.msra.mxu0 0
        %606 = vmatprep.subr.bf16.mxu0 0
        %607 = vmatpush1.bf16.msra.mxu0 0
        %608 = vmatprep.subr.bf16.mxu0 0
        %609 = vmatpush1.bf16.msra.mxu0 0
        %610 = vmatprep.subr.bf16.mxu0 0
        %611 = vmatpush1.bf16.msra.mxu0 0
        %612 = vmatprep.subr.bf16.mxu0 0
        %613 = vmatpush1.bf16.msra.mxu0 0
        %614 = vmatprep.subr.bf16.mxu0 0
        %615 = vmatpush1.bf16.msra.mxu0 0
        %616 = vmatprep.subr.bf16.mxu0 0
        %617 = vmatpush1.bf16.msra.mxu0 0
        %618 = vmatprep.subr.bf16.mxu0 0
        %619 = vmatpush1.bf16.msra.mxu0 0
        %620 = vmatprep.subr.bf16.mxu0 0
        %621 = vmatpush1.bf16.msra.mxu0 0
        %622 = vmatprep.subr.bf16.mxu0 0
        %623 = vmatpush1.bf16.msra.mxu0 0
        %624 = vmatprep.subr.bf16.mxu0 0
        %625 = vmatpush1.bf16.msra.mxu0 0
        %626 = vmatprep.subr.bf16.mxu0 0
        %627 = vmatpush1.bf16.msra.mxu0 0
        %628 = vmatprep.subr.bf16.mxu0 0
        %629 = vmatpush1.bf16.msra.mxu0 0
        %630 = vmatprep.subr.bf16.mxu0 0
        %631 = vmatpush1.bf16.msra.mxu0 0
        %632 = vmatprep.mubr.bf16.mxu0 0
        %633 = vmatmul.mubr.bf16.gmra.mrb[0].mxu0 %v589
        %v634 = vpop.f32.mrb[0].mxu0
        %v635 = vadd.f32 0.0, %v634
        %v636 = vpop.f32.mrb[0].mxu0
        %v637 = vpop.f32.mrb[0].mxu0
        %v638 = vadd.f32 0.0, %v637
        %v639 = vpop.f32.mrb[0].mxu0
        %640 = vmatprep.mubr.bf16.mxu0 0
        %641 = vmatmul.mubr.bf16.gmra.mrb[0].mxu0 %v592
        %v642 = vpop.f32.mrb[0].mxu0
        %v643 = vadd.f32 0.0, %v642
        %v644 = vpop.f32.mrb[0].mxu0
        %v645 = vpop.f32.mrb[0].mxu0
        %v646 = vadd.f32 0.0, %v645
        %v647 = vpop.f32.mrb[0].mxu0
        %648 = vmatprep.mubr.bf16.mxu0 0
        %649 = vmatmul.mubr.bf16.gmra.mrb[0].mxu0 %v595
        %v650 = vpop.f32.mrb[0].mxu0
        %v651 = vadd.f32 0.0, %v650
        %v652 = vpop.f32.mrb[0].mxu0
        %v653 = vpop.f32.mrb[0].mxu0
        %v654 = vadd.f32 0.0, %v653
        %v655 = vpop.f32.mrb[0].mxu0
        %656 = vmatprep.mubr.bf16.mxu0 0
        %657 = vmatmul.mubr.bf16.gmra.mrb[0].mxu0 %v598
        %v658 = vpop.f32.mrb[0].mxu0
        %v659 = vadd.f32 0.0, %v658
        %v660 = vpop.f32.mrb[0].mxu0
        %v661 = vpop.f32.mrb[0].mxu0
        %v662 = vadd.f32 0.0, %v661
        %v663 = vpop.f32.mrb[0].mxu0
        %664 = vdwg.mxu0
        %v665 = vadd.f32 %v488, %v635
        %v666 = vadd.f32 %v491, %v638
        %v667 = vadd.f32 %v496, %v643
        %v668 = vadd.f32 %v499, %v646
        %v669 = vadd.f32 %v504, %v651
        %v670 = vadd.f32 %v507, %v654
        %v671 = vadd.f32 %v512, %v659
        %v672 = vadd.f32 %v515, %v662
        %v673 = vpack.c.bf16 %v300, %v298
        %v674 = vpack.c.bf16 %v304, %v302
        %v675 = vpack.c.bf16 %v308, %v306
        %v676 = vpack.c.bf16 %v312, %v310
        %s677 = scalar_lea.vmem %s1, 48
        %v678 = vld [vmem:[%s677] sm:$0xf]
        %v679 = vld [vmem:[%s677 + $0x4] sm:$0xf]
        %v680 = vld [vmem:[%s677 + $0x8] sm:$0xf]
        %v681 = vld [vmem:[%s677 + $0xc] sm:$0xf]
        %v686 = vunpack.c.l.b16 %v678
        %v687 = vunpack.c.l.b16 %v679
        %v688 = vunpack.c.l.b16 %v680
        %v689 = vunpack.c.l.b16 %v681
        %v690 = vpack.c.b16 %v687, %v686
        %v691 = vpack.c.b16 %v689, %v688
        %v695 = vsel %vm351, %v673, 0
        %v698 = vsel %vm351, %v674, 0
        %v701 = vsel %vm351, %v675, 0
        %v704 = vsel %vm351, %v676, 0
        %706 = vmatprep.subr.bf16.mxu0 0
        %707 = vmatpush1.bf16.msra.mxu0 %v690
        %708 = vmatprep.subr.bf16.mxu0 0
        %709 = vmatpush1.bf16.msra.mxu0 %v691
        %710 = vmatprep.subr.bf16.mxu0 0
        %711 = vmatpush1.bf16.msra.mxu0 0
        %712 = vmatprep.subr.bf16.mxu0 0
        %713 = vmatpush1.bf16.msra.mxu0 0
        %714 = vmatprep.subr.bf16.mxu0 0
        %715 = vmatpush1.bf16.msra.mxu0 0
        %716 = vmatprep.subr.bf16.mxu0 0
        %717 = vmatpush1.bf16.msra.mxu0 0
        %718 = vmatprep.subr.bf16.mxu0 0
        %719 = vmatpush1.bf16.msra.mxu0 0
        %720 = vmatprep.subr.bf16.mxu0 0
        %721 = vmatpush1.bf16.msra.mxu0 0
        %722 = vmatprep.subr.bf16.mxu0 0
        %723 = vmatpush1.bf16.msra.mxu0 0
        %724 = vmatprep.subr.bf16.mxu0 0
        %725 = vmatpush1.bf16.msra.mxu0 0
        %726 = vmatprep.subr.bf16.mxu0 0
        %727 = vmatpush1.bf16.msra.mxu0 0
        %728 = vmatprep.subr.bf16.mxu0 0
        %729 = vmatpush1.bf16.msra.mxu0 0
        %730 = vmatprep.subr.bf16.mxu0 0
        %731 = vmatpush1.bf16.msra.mxu0 0
        %732 = vmatprep.subr.bf16.mxu0 0
        %733 = vmatpush1.bf16.msra.mxu0 0
        %734 = vmatprep.subr.bf16.mxu0 0
        %735 = vmatpush1.bf16.msra.mxu0 0
        %736 = vmatprep.subr.bf16.mxu0 0
        %737 = vmatpush1.bf16.msra.mxu0 0
        %738 = vmatprep.mubr.bf16.mxu0 0
        %739 = vmatmul.mubr.bf16.gmra.mrb[0].mxu0 %v695
        %v740 = vpop.f32.mrb[0].mxu0
        %v741 = vadd.f32 0.0, %v740
        %v742 = vpop.f32.mrb[0].mxu0
        %v743 = vpop.f32.mrb[0].mxu0
        %v744 = vadd.f32 0.0, %v743
        %v745 = vpop.f32.mrb[0].mxu0
        %746 = vmatprep.mubr.bf16.mxu0 0
        %747 = vmatmul.mubr.bf16.gmra.mrb[0].mxu0 %v698
        %v748 = vpop.f32.mrb[0].mxu0
        %v749 = vadd.f32 0.0, %v748
        %v750 = vpop.f32.mrb[0].mxu0
        %v751 = vpop.f32.mrb[0].mxu0
        %v752 = vadd.f32 0.0, %v751
        %v753 = vpop.f32.mrb[0].mxu0
        %754 = vmatprep.mubr.bf16.mxu0 0
        %755 = vmatmul.mubr.bf16.gmra.mrb[0].mxu0 %v701
        %v756 = vpop.f32.mrb[0].mxu0
        %v757 = vadd.f32 0.0, %v756
        %v758 = vpop.f32.mrb[0].mxu0
        %v759 = vpop.f32.mrb[0].mxu0
        %v760 = vadd.f32 0.0, %v759
        %v761 = vpop.f32.mrb[0].mxu0
        %762 = vmatprep.mubr.bf16.mxu0 0
        %763 = vmatmul.mubr.bf16.gmra.mrb[0].mxu0 %v704
        %v764 = vpop.f32.mrb[0].mxu0
        %v765 = vadd.f32 0.0, %v764
        %v766 = vpop.f32.mrb[0].mxu0
        %v767 = vpop.f32.mrb[0].mxu0
        %v768 = vadd.f32 0.0, %v767
        %v769 = vpop.f32.mrb[0].mxu0
        %770 = vdwg.mxu0
        %v771 = vadd.f32 %v665, %v741
        %v772 = vadd.f32 %v666, %v744
        %v773 = vadd.f32 %v667, %v749
        %v774 = vadd.f32 %v668, %v752
        %v775 = vadd.f32 %v669, %v757
        %v776 = vadd.f32 %v670, %v760
        %v777 = vadd.f32 %v671, %v765
        %v778 = vadd.f32 %v672, %v768
        %v779 = vpack.c.bf16 %v315, %v314
        %v780 = vpack.c.bf16 %v317, %v316
        %v781 = vpack.c.bf16 %v319, %v318
        %v782 = vpack.c.bf16 %v321, %v320
        %s783 = scalar_lea.vmem %s1, 64
        %v784 = vld [vmem:[%s783] sm:$0xf]
        %v785 = vld [vmem:[%s783 + $0x4] sm:$0xf]
        %v786 = vld [vmem:[%s783 + $0x8] sm:$0xf]
        %v787 = vld [vmem:[%s783 + $0xc] sm:$0xf]
        %v792 = vunpack.c.l.b16 %v784
        %v793 = vunpack.c.l.b16 %v785
        %v794 = vunpack.c.l.b16 %v786
        %v795 = vunpack.c.l.b16 %v787
        %v796 = vpack.c.b16 %v793, %v792
        %v797 = vpack.c.b16 %v795, %v794
        %v801 = vsel %vm351, %v779, 0
        %v804 = vsel %vm351, %v780, 0
        %v807 = vsel %vm351, %v781, 0
        %v810 = vsel %vm351, %v782, 0
        %812 = vmatprep.subr.bf16.mxu0 0
        %813 = vmatpush1.bf16.msra.mxu0 %v796
        %814 = vmatprep.subr.bf16.mxu0 0
        %815 = vmatpush1.bf16.msra.mxu0 %v797
        %816 = vmatprep.subr.bf16.mxu0 0
        %817 = vmatpush1.bf16.msra.mxu0 0
        %818 = vmatprep.subr.bf16.mxu0 0
        %819 = vmatpush1.bf16.msra.mxu0 0
        %820 = vmatprep.subr.bf16.mxu0 0
        %821 = vmatpush1.bf16.msra.mxu0 0
        %822 = vmatprep.subr.bf16.mxu0 0
        %823 = vmatpush1.bf16.msra.mxu0 0
        %824 = vmatprep.subr.bf16.mxu0 0
        %825 = vmatpush1.bf16.msra.mxu0 0
        %826 = vmatprep.subr.bf16.mxu0 0
        %827 = vmatpush1.bf16.msra.mxu0 0
        %828 = vmatprep.subr.bf16.mxu0 0
        %829 = vmatpush1.bf16.msra.mxu0 0
        %830 = vmatprep.subr.bf16.mxu0 0
        %831 = vmatpush1.bf16.msra.mxu0 0
        %832 = vmatprep.subr.bf16.mxu0 0
        %833 = vmatpush1.bf16.msra.mxu0 0
        %834 = vmatprep.subr.bf16.mxu0 0
        %835 = vmatpush1.bf16.msra.mxu0 0
        %836 = vmatprep.subr.bf16.mxu0 0
        %837 = vmatpush1.bf16.msra.mxu0 0
        %838 = vmatprep.subr.bf16.mxu0 0
        %839 = vmatpush1.bf16.msra.mxu0 0
        %840 = vmatprep.subr.bf16.mxu0 0
        %841 = vmatpush1.bf16.msra.mxu0 0
        %842 = vmatprep.subr.bf16.mxu0 0
        %843 = vmatpush1.bf16.msra.mxu0 0
        %844 = vmatprep.mubr.bf16.mxu0 0
        %845 = vmatmul.mubr.bf16.gmra.mrb[0].mxu0 %v801
        %v846 = vpop.f32.mrb[0].mxu0
        %v847 = vadd.f32 0.0, %v846
        %v848 = vpop.f32.mrb[0].mxu0
        %v849 = vpop.f32.mrb[0].mxu0
        %v850 = vadd.f32 0.0, %v849
        %v851 = vpop.f32.mrb[0].mxu0
        %852 = vmatprep.mubr.bf16.mxu0 0
        %853 = vmatmul.mubr.bf16.gmra.mrb[0].mxu0 %v804
        %v854 = vpop.f32.mrb[0].mxu0
        %v855 = vadd.f32 0.0, %v854
        %v856 = vpop.f32.mrb[0].mxu0
        %v857 = vpop.f32.mrb[0].mxu0
        %v858 = vadd.f32 0.0, %v857
        %v859 = vpop.f32.mrb[0].mxu0
        %860 = vmatprep.mubr.bf16.mxu0 0
        %861 = vmatmul.mubr.bf16.gmra.mrb[0].mxu0 %v807
        %v862 = vpop.f32.mrb[0].mxu0
        %v863 = vadd.f32 0.0, %v862
        %v864 = vpop.f32.mrb[0].mxu0
        %v865 = vpop.f32.mrb[0].mxu0
        %v866 = vadd.f32 0.0, %v865
        %v867 = vpop.f32.mrb[0].mxu0
        %868 = vmatprep.mubr.bf16.mxu0 0
        %869 = vmatmul.mubr.bf16.gmra.mrb[0].mxu0 %v810
        %v870 = vpop.f32.mrb[0].mxu0
        %v871 = vadd.f32 0.0, %v870
        %v872 = vpop.f32.mrb[0].mxu0
        %v873 = vpop.f32.mrb[0].mxu0
        %v874 = vadd.f32 0.0, %v873
        %v875 = vpop.f32.mrb[0].mxu0
        %876 = vdwg.mxu0
        %v877 = vadd.f32 %v771, %v847
        %v878 = vadd.f32 %v772, %v850
        %v879 = vadd.f32 %v773, %v855
        %v880 = vadd.f32 %v774, %v858
        %v881 = vadd.f32 %v775, %v863
        %v882 = vadd.f32 %v776, %v866
        %v883 = vadd.f32 %v777, %v871
        %v884 = vadd.f32 %v778, %v874
        %v901 = vrot.slane %v298, 1
        %v902 = vrot.slane %v299, 1
        %v903 = vsel %vm534, %v901, %v902
        %v904 = vrot.slane %v300, 1
        %v905 = vrot.slane %v301, 1
        %v906 = vsel %vm534, %v904, %v905
        %v907 = vrot.slane %v302, 1
        %v908 = vrot.slane %v303, 1
        %v909 = vsel %vm534, %v907, %v908
        %v910 = vrot.slane %v304, 1
        %v911 = vrot.slane %v305, 1
        %v912 = vsel %vm534, %v910, %v911
        %v913 = vrot.slane %v306, 1
        %v914 = vrot.slane %v307, 1
        %v915 = vsel %vm534, %v913, %v914
        %v916 = vrot.slane %v308, 1
        %v917 = vrot.slane %v309, 1
        %v918 = vsel %vm534, %v916, %v917
        %v919 = vrot.slane %v310, 1
        %v920 = vrot.slane %v311, 1
        %v921 = vsel %vm534, %v919, %v920
        %v922 = vrot.slane %v312, 1
        %v923 = vrot.slane %v313, 1
        %v924 = vsel %vm534, %v922, %v923
        %v933 = vpack.c.bf16 %v906, %v903
        %v934 = vpack.c.bf16 %v912, %v909
        %v935 = vpack.c.bf16 %v918, %v915
        %v936 = vpack.c.bf16 %v924, %v921
        %s937 = scalar_lea.vmem %s1, 80
        %v938 = vld [vmem:[%s937] sm:$0xf]
        %v939 = vld [vmem:[%s937 + $0x4] sm:$0xf]
        %v940 = vld [vmem:[%s937 + $0x8] sm:$0xf]
        %v941 = vld [vmem:[%s937 + $0xc] sm:$0xf]
        %v946 = vunpack.c.l.b16 %v938
        %v947 = vunpack.c.l.b16 %v939
        %v948 = vunpack.c.l.b16 %v940
        %v949 = vunpack.c.l.b16 %v941
        %v950 = vpack.c.b16 %v947, %v946
        %v951 = vpack.c.b16 %v949, %v948
        %v955 = vsel %vm351, %v933, 0
        %v958 = vsel %vm351, %v934, 0
        %v961 = vsel %vm351, %v935, 0
        %v964 = vsel %vm351, %v936, 0
        %966 = vmatprep.subr.bf16.mxu0 0
        %967 = vmatpush1.bf16.msra.mxu0 %v950
        %968 = vmatprep.subr.bf16.mxu0 0
        %969 = vmatpush1.bf16.msra.mxu0 %v951
        %970 = vmatprep.subr.bf16.mxu0 0
        %971 = vmatpush1.bf16.msra.mxu0 0
        %972 = vmatprep.subr.bf16.mxu0 0
        %973 = vmatpush1.bf16.msra.mxu0 0
        %974 = vmatprep.subr.bf16.mxu0 0
        %975 = vmatpush1.bf16.msra.mxu0 0
        %976 = vmatprep.subr.bf16.mxu0 0
        %977 = vmatpush1.bf16.msra.mxu0 0
        %978 = vmatprep.subr.bf16.mxu0 0
        %979 = vmatpush1.bf16.msra.mxu0 0
        %980 = vmatprep.subr.bf16.mxu0 0
        %981 = vmatpush1.bf16.msra.mxu0 0
        %982 = vmatprep.subr.bf16.mxu0 0
        %983 = vmatpush1.bf16.msra.mxu0 0
        %984 = vmatprep.subr.bf16.mxu0 0
        %985 = vmatpush1.bf16.msra.mxu0 0
        %986 = vmatprep.subr.bf16.mxu0 0
        %987 = vmatpush1.bf16.msra.mxu0 0
        %988 = vmatprep.subr.bf16.mxu0 0
        %989 = vmatpush1.bf16.msra.mxu0 0
        %990 = vmatprep.subr.bf16.mxu0 0
        %991 = vmatpush1.bf16.msra.mxu0 0
        %992 = vmatprep.subr.bf16.mxu0 0
        %993 = vmatpush1.bf16.msra.mxu0 0
        %994 = vmatprep.subr.bf16.mxu0 0
        %995 = vmatpush1.bf16.msra.mxu0 0
        %996 = vmatprep.subr.bf16.mxu0 0
        %997 = vmatpush1.bf16.msra.mxu0 0
        %998 = vmatprep.mubr.bf16.mxu0 0
        %999 = vmatmul.mubr.bf16.gmra.mrb[0].mxu0 %v955
        %v1000 = vpop.f32.mrb[0].mxu0
        %v1001 = vadd.f32 0.0, %v1000
        %v1002 = vpop.f32.mrb[0].mxu0
        %v1003 = vpop.f32.mrb[0].mxu0
        %v1004 = vadd.f32 0.0, %v1003
        %v1005 = vpop.f32.mrb[0].mxu0
        %1006 = vmatprep.mubr.bf16.mxu0 0
        %1007 = vmatmul.mubr.bf16.gmra.mrb[0].mxu0 %v958
        %v1008 = vpop.f32.mrb[0].mxu0
        %v1009 = vadd.f32 0.0, %v1008
        %v1010 = vpop.f32.mrb[0].mxu0
        %v1011 = vpop.f32.mrb[0].mxu0
        %v1012 = vadd.f32 0.0, %v1011
        %v1013 = vpop.f32.mrb[0].mxu0
        %1014 = vmatprep.mubr.bf16.mxu0 0
        %1015 = vmatmul.mubr.bf16.gmra.mrb[0].mxu0 %v961
        %v1016 = vpop.f32.mrb[0].mxu0
        %v1017 = vadd.f32 0.0, %v1016
        %v1018 = vpop.f32.mrb[0].mxu0
        %v1019 = vpop.f32.mrb[0].mxu0
        %v1020 = vadd.f32 0.0, %v1019
        %v1021 = vpop.f32.mrb[0].mxu0
        %1022 = vmatprep.mubr.bf16.mxu0 0
        %1023 = vmatmul.mubr.bf16.gmra.mrb[0].mxu0 %v964
        %v1024 = vpop.f32.mrb[0].mxu0
        %v1025 = vadd.f32 0.0, %v1024
        %v1026 = vpop.f32.mrb[0].mxu0
        %v1027 = vpop.f32.mrb[0].mxu0
        %v1028 = vadd.f32 0.0, %v1027
        %v1029 = vpop.f32.mrb[0].mxu0
        %1030 = vdwg.mxu0
        %v1031 = vadd.f32 %v877, %v1001
        %v1032 = vadd.f32 %v878, %v1004
        %v1033 = vadd.f32 %v879, %v1009
        %v1034 = vadd.f32 %v880, %v1012
        %v1035 = vadd.f32 %v881, %v1017
        %v1036 = vadd.f32 %v882, %v1020
        %v1037 = vadd.f32 %v883, %v1025
        %v1038 = vadd.f32 %v884, %v1028
        %v1039 = vpack.c.bf16 %v275, %v273
        %v1040 = vpack.c.bf16 %v279, %v277
        %v1041 = vpack.c.bf16 %v283, %v281
        %v1042 = vpack.c.bf16 %v287, %v285
        %s1043 = scalar_lea.vmem %s1, 96
        %v1044 = vld [vmem:[%s1043] sm:$0xf]
        %v1045 = vld [vmem:[%s1043 + $0x4] sm:$0xf]
        %v1046 = vld [vmem:[%s1043 + $0x8] sm:$0xf]
        %v1047 = vld [vmem:[%s1043 + $0xc] sm:$0xf]
        %v1052 = vunpack.c.l.b16 %v1044
        %v1053 = vunpack.c.l.b16 %v1045
        %v1054 = vunpack.c.l.b16 %v1046
        %v1055 = vunpack.c.l.b16 %v1047
        %v1056 = vpack.c.b16 %v1053, %v1052
        %v1057 = vpack.c.b16 %v1055, %v1054
        %v1061 = vsel %vm351, %v1039, 0
        %v1064 = vsel %vm351, %v1040, 0
        %v1067 = vsel %vm351, %v1041, 0
        %v1070 = vsel %vm351, %v1042, 0
        %1072 = vmatprep.subr.bf16.mxu0 0
        %1073 = vmatpush1.bf16.msra.mxu0 %v1056
        %1074 = vmatprep.subr.bf16.mxu0 0
        %1075 = vmatpush1.bf16.msra.mxu0 %v1057
        %1076 = vmatprep.subr.bf16.mxu0 0
        %1077 = vmatpush1.bf16.msra.mxu0 0
        %1078 = vmatprep.subr.bf16.mxu0 0
        %1079 = vmatpush1.bf16.msra.mxu0 0
        %1080 = vmatprep.subr.bf16.mxu0 0
        %1081 = vmatpush1.bf16.msra.mxu0 0
        %1082 = vmatprep.subr.bf16.mxu0 0
        %1083 = vmatpush1.bf16.msra.mxu0 0
        %1084 = vmatprep.subr.bf16.mxu0 0
        %1085 = vmatpush1.bf16.msra.mxu0 0
        %1086 = vmatprep.subr.bf16.mxu0 0
        %1087 = vmatpush1.bf16.msra.mxu0 0
        %1088 = vmatprep.subr.bf16.mxu0 0
        %1089 = vmatpush1.bf16.msra.mxu0 0
        %1090 = vmatprep.subr.bf16.mxu0 0
        %1091 = vmatpush1.bf16.msra.mxu0 0
        %1092 = vmatprep.subr.bf16.mxu0 0
        %1093 = vmatpush1.bf16.msra.mxu0 0
        %1094 = vmatprep.subr.bf16.mxu0 0
        %1095 = vmatpush1.bf16.msra.mxu0 0
        %1096 = vmatprep.subr.bf16.mxu0 0
        %1097 = vmatpush1.bf16.msra.mxu0 0
        %1098 = vmatprep.subr.bf16.mxu0 0
        %1099 = vmatpush1.bf16.msra.mxu0 0
        %1100 = vmatprep.subr.bf16.mxu0 0
        %1101 = vmatpush1.bf16.msra.mxu0 0
        %1102 = vmatprep.subr.bf16.mxu0 0
        %1103 = vmatpush1.bf16.msra.mxu0 0
        %1104 = vmatprep.mubr.bf16.mxu0 0
        %1105 = vmatmul.mubr.bf16.gmra.mrb[0].mxu0 %v1061
        %v1106 = vpop.f32.mrb[0].mxu0
        %v1107 = vadd.f32 0.0, %v1106
        %v1108 = vpop.f32.mrb[0].mxu0
        %v1109 = vpop.f32.mrb[0].mxu0
        %v1110 = vadd.f32 0.0, %v1109
        %v1111 = vpop.f32.mrb[0].mxu0
        %1112 = vmatprep.mubr.bf16.mxu0 0
        %1113 = vmatmul.mubr.bf16.gmra.mrb[0].mxu0 %v1064
        %v1114 = vpop.f32.mrb[0].mxu0
        %v1115 = vadd.f32 0.0, %v1114
        %v1116 = vpop.f32.mrb[0].mxu0
        %v1117 = vpop.f32.mrb[0].mxu0
        %v1118 = vadd.f32 0.0, %v1117
        %v1119 = vpop.f32.mrb[0].mxu0
        %1120 = vmatprep.mubr.bf16.mxu0 0
        %1121 = vmatmul.mubr.bf16.gmra.mrb[0].mxu0 %v1067
        %v1122 = vpop.f32.mrb[0].mxu0
        %v1123 = vadd.f32 0.0, %v1122
        %v1124 = vpop.f32.mrb[0].mxu0
        %v1125 = vpop.f32.mrb[0].mxu0
        %v1126 = vadd.f32 0.0, %v1125
        %v1127 = vpop.f32.mrb[0].mxu0
        %1128 = vmatprep.mubr.bf16.mxu0 0
        %1129 = vmatmul.mubr.bf16.gmra.mrb[0].mxu0 %v1070
        %v1130 = vpop.f32.mrb[0].mxu0
        %v1131 = vadd.f32 0.0, %v1130
        %v1132 = vpop.f32.mrb[0].mxu0
        %v1133 = vpop.f32.mrb[0].mxu0
        %v1134 = vadd.f32 0.0, %v1133
        %v1135 = vpop.f32.mrb[0].mxu0
        %1136 = vdwg.mxu0
        %v1137 = vadd.f32 %v1031, %v1107
        %v1138 = vadd.f32 %v1032, %v1110
        %v1139 = vadd.f32 %v1033, %v1115
        %v1140 = vadd.f32 %v1034, %v1118
        %v1141 = vadd.f32 %v1035, %v1123
        %v1142 = vadd.f32 %v1036, %v1126
        %v1143 = vadd.f32 %v1037, %v1131
        %v1144 = vadd.f32 %v1038, %v1134
        %v1145 = vpack.c.bf16 %v291, %v290
        %v1146 = vpack.c.bf16 %v293, %v292
        %v1147 = vpack.c.bf16 %v295, %v294
        %v1148 = vpack.c.bf16 %v297, %v296
        %s1149 = scalar_lea.vmem %s1, 112
        %v1150 = vld [vmem:[%s1149] sm:$0xf]
        %v1151 = vld [vmem:[%s1149 + $0x4] sm:$0xf]
        %v1152 = vld [vmem:[%s1149 + $0x8] sm:$0xf]
        %v1153 = vld [vmem:[%s1149 + $0xc] sm:$0xf]
        %v1158 = vunpack.c.l.b16 %v1150
        %v1159 = vunpack.c.l.b16 %v1151
        %v1160 = vunpack.c.l.b16 %v1152
        %v1161 = vunpack.c.l.b16 %v1153
        %v1162 = vpack.c.b16 %v1159, %v1158
        %v1163 = vpack.c.b16 %v1161, %v1160
        %v1167 = vsel %vm351, %v1145, 0
        %v1170 = vsel %vm351, %v1146, 0
        %v1173 = vsel %vm351, %v1147, 0
        %v1176 = vsel %vm351, %v1148, 0
        %1178 = vmatprep.subr.bf16.mxu0 0
        %1179 = vmatpush1.bf16.msra.mxu0 %v1162
        %1180 = vmatprep.subr.bf16.mxu0 0
        %1181 = vmatpush1.bf16.msra.mxu0 %v1163
        %1182 = vmatprep.subr.bf16.mxu0 0
        %1183 = vmatpush1.bf16.msra.mxu0 0
        %1184 = vmatprep.subr.bf16.mxu0 0
        %1185 = vmatpush1.bf16.msra.mxu0 0
        %1186 = vmatprep.subr.bf16.mxu0 0
        %1187 = vmatpush1.bf16.msra.mxu0 0
        %1188 = vmatprep.subr.bf16.mxu0 0
        %1189 = vmatpush1.bf16.msra.mxu0 0
        %1190 = vmatprep.subr.bf16.mxu0 0
        %1191 = vmatpush1.bf16.msra.mxu0 0
        %1192 = vmatprep.subr.bf16.mxu0 0
        %1193 = vmatpush1.bf16.msra.mxu0 0
        %1194 = vmatprep.subr.bf16.mxu0 0
        %1195 = vmatpush1.bf16.msra.mxu0 0
        %1196 = vmatprep.subr.bf16.mxu0 0
        %1197 = vmatpush1.bf16.msra.mxu0 0
        %1198 = vmatprep.subr.bf16.mxu0 0
        %1199 = vmatpush1.bf16.msra.mxu0 0
        %1200 = vmatprep.subr.bf16.mxu0 0
        %1201 = vmatpush1.bf16.msra.mxu0 0
        %1202 = vmatprep.subr.bf16.mxu0 0
        %1203 = vmatpush1.bf16.msra.mxu0 0
        %1204 = vmatprep.subr.bf16.mxu0 0
        %1205 = vmatpush1.bf16.msra.mxu0 0
        %1206 = vmatprep.subr.bf16.mxu0 0
        %1207 = vmatpush1.bf16.msra.mxu0 0
        %1208 = vmatprep.subr.bf16.mxu0 0
        %1209 = vmatpush1.bf16.msra.mxu0 0
        %1210 = vmatprep.mubr.bf16.mxu0 0
        %1211 = vmatmul.mubr.bf16.gmra.mrb[0].mxu0 %v1167
        %v1212 = vpop.f32.mrb[0].mxu0
        %v1213 = vadd.f32 0.0, %v1212
        %v1214 = vpop.f32.mrb[0].mxu0
        %v1215 = vpop.f32.mrb[0].mxu0
        %v1216 = vadd.f32 0.0, %v1215
        %v1217 = vpop.f32.mrb[0].mxu0
        %1218 = vmatprep.mubr.bf16.mxu0 0
        %1219 = vmatmul.mubr.bf16.gmra.mrb[0].mxu0 %v1170
        %v1220 = vpop.f32.mrb[0].mxu0
        %v1221 = vadd.f32 0.0, %v1220
        %v1222 = vpop.f32.mrb[0].mxu0
        %v1223 = vpop.f32.mrb[0].mxu0
        %v1224 = vadd.f32 0.0, %v1223
        %v1225 = vpop.f32.mrb[0].mxu0
        %1226 = vmatprep.mubr.bf16.mxu0 0
        %1227 = vmatmul.mubr.bf16.gmra.mrb[0].mxu0 %v1173
        %v1228 = vpop.f32.mrb[0].mxu0
        %v1229 = vadd.f32 0.0, %v1228
        %v1230 = vpop.f32.mrb[0].mxu0
        %v1231 = vpop.f32.mrb[0].mxu0
        %v1232 = vadd.f32 0.0, %v1231
        %v1233 = vpop.f32.mrb[0].mxu0
        %1234 = vmatprep.mubr.bf16.mxu0 0
        %1235 = vmatmul.mubr.bf16.gmra.mrb[0].mxu0 %v1176
        %v1236 = vpop.f32.mrb[0].mxu0
        %v1237 = vadd.f32 0.0, %v1236
        %v1238 = vpop.f32.mrb[0].mxu0
        %v1239 = vpop.f32.mrb[0].mxu0
        %v1240 = vadd.f32 0.0, %v1239
        %v1241 = vpop.f32.mrb[0].mxu0
        %1242 = vdwg.mxu0
        %v1243 = vadd.f32 %v1137, %v1213
        %v1244 = vadd.f32 %v1138, %v1216
        %v1245 = vadd.f32 %v1139, %v1221
        %v1246 = vadd.f32 %v1140, %v1224
        %v1247 = vadd.f32 %v1141, %v1229
        %v1248 = vadd.f32 %v1142, %v1232
        %v1249 = vadd.f32 %v1143, %v1237
        %v1250 = vadd.f32 %v1144, %v1240
        %v1253 = vrot.slane %v287, 1
        %v1254 = vrot.slane %v288, 1
        %v1255 = vsel %vm534, %v1253, %v1254
        %v1257 = vpack.c.bf16 %v543, %v540
        %v1258 = vpack.c.bf16 %v549, %v546
        %v1259 = vpack.c.bf16 %v555, %v552
        %v1260 = vpack.c.bf16 %v1255, %v558
        %s1261 = scalar_lea.vmem %s1, 128
        %v1262 = vld [vmem:[%s1261] sm:$0xf]
        %v1263 = vld [vmem:[%s1261 + $0x4] sm:$0xf]
        %v1264 = vld [vmem:[%s1261 + $0x8] sm:$0xf]
        %v1265 = vld [vmem:[%s1261 + $0xc] sm:$0xf]
        %v1270 = vunpack.c.l.b16 %v1262
        %v1271 = vunpack.c.l.b16 %v1263
        %v1272 = vunpack.c.l.b16 %v1264
        %v1273 = vunpack.c.l.b16 %v1265
        %v1274 = vpack.c.b16 %v1271, %v1270
        %v1275 = vpack.c.b16 %v1273, %v1272
        %v1279 = vsel %vm351, %v1257, 0
        %v1282 = vsel %vm351, %v1258, 0
        %v1285 = vsel %vm351, %v1259, 0
        %v1288 = vsel %vm351, %v1260, 0
        %1290 = vmatprep.subr.bf16.mxu0 0
        %1291 = vmatpush1.bf16.msra.mxu0 %v1274
        %1292 = vmatprep.subr.bf16.mxu0 0
        %1293 = vmatpush1.bf16.msra.mxu0 %v1275
        %1294 = vmatprep.subr.bf16.mxu0 0
        %1295 = vmatpush1.bf16.msra.mxu0 0
        %1296 = vmatprep.subr.bf16.mxu0 0
        %1297 = vmatpush1.bf16.msra.mxu0 0
        %1298 = vmatprep.subr.bf16.mxu0 0
        %1299 = vmatpush1.bf16.msra.mxu0 0
        %1300 = vmatprep.subr.bf16.mxu0 0
        %1301 = vmatpush1.bf16.msra.mxu0 0
        %1302 = vmatprep.subr.bf16.mxu0 0
        %1303 = vmatpush1.bf16.msra.mxu0 0
        %1304 = vmatprep.subr.bf16.mxu0 0
        %1305 = vmatpush1.bf16.msra.mxu0 0
        %1306 = vmatprep.subr.bf16.mxu0 0
        %1307 = vmatpush1.bf16.msra.mxu0 0
        %1308 = vmatprep.subr.bf16.mxu0 0
        %1309 = vmatpush1.bf16.msra.mxu0 0
        %1310 = vmatprep.subr.bf16.mxu0 0
        %1311 = vmatpush1.bf16.msra.mxu0 0
        %1312 = vmatprep.subr.bf16.mxu0 0
        %1313 = vmatpush1.bf16.msra.mxu0 0
        %1314 = vmatprep.subr.bf16.mxu0 0
        %1315 = vmatpush1.bf16.msra.mxu0 0
        %1316 = vmatprep.subr.bf16.mxu0 0
        %1317 = vmatpush1.bf16.msra.mxu0 0
        %1318 = vmatprep.subr.bf16.mxu0 0
        %1319 = vmatpush1.bf16.msra.mxu0 0
        %1320 = vmatprep.subr.bf16.mxu0 0
        %1321 = vmatpush1.bf16.msra.mxu0 0
        %1322 = vmatprep.mubr.bf16.mxu0 0
        %1323 = vmatmul.mubr.bf16.gmra.mrb[0].mxu0 %v1279
        %v1324 = vpop.f32.mrb[0].mxu0
        %v1325 = vadd.f32 0.0, %v1324
        %v1326 = vpop.f32.mrb[0].mxu0
        %v1327 = vpop.f32.mrb[0].mxu0
        %v1328 = vadd.f32 0.0, %v1327
        %v1329 = vpop.f32.mrb[0].mxu0
        %1330 = vmatprep.mubr.bf16.mxu0 0
        %1331 = vmatmul.mubr.bf16.gmra.mrb[0].mxu0 %v1282
        %v1332 = vpop.f32.mrb[0].mxu0
        %v1333 = vadd.f32 0.0, %v1332
        %v1334 = vpop.f32.mrb[0].mxu0
        %v1335 = vpop.f32.mrb[0].mxu0
        %v1336 = vadd.f32 0.0, %v1335
        %v1337 = vpop.f32.mrb[0].mxu0
        %1338 = vmatprep.mubr.bf16.mxu0 0
        %1339 = vmatmul.mubr.bf16.gmra.mrb[0].mxu0 %v1285
        %v1340 = vpop.f32.mrb[0].mxu0
        %v1341 = vadd.f32 0.0, %v1340
        %v1342 = vpop.f32.mrb[0].mxu0
        %v1343 = vpop.f32.mrb[0].mxu0
        %v1344 = vadd.f32 0.0, %v1343
        %v1345 = vpop.f32.mrb[0].mxu0
        %1346 = vmatprep.mubr.bf16.mxu0 0
        %1347 = vmatmul.mubr.bf16.gmra.mrb[0].mxu0 %v1288
        %v1348 = vpop.f32.mrb[0].mxu0
        %v1349 = vadd.f32 0.0, %v1348
        %v1350 = vpop.f32.mrb[0].mxu0
        %v1351 = vpop.f32.mrb[0].mxu0
        %v1352 = vadd.f32 0.0, %v1351
        %v1353 = vpop.f32.mrb[0].mxu0
        %1354 = vdwg.mxu0
        %v1355 = vadd.f32 %v1243, %v1325
        %v1356 = vadd.f32 %v1244, %v1328
        %v1357 = vadd.f32 %v1245, %v1333
        %v1358 = vadd.f32 %v1246, %v1336
        %v1359 = vadd.f32 %v1247, %v1341
        %v1360 = vadd.f32 %v1248, %v1344
        %v1361 = vadd.f32 %v1249, %v1349
        %v1362 = vadd.f32 %v1250, %v1352
        %v1363 = vld [vmem:[%s2] sm:$0x1]
        %v1365 = vlaneseq
        %v1366 = vshrl.u32 %v1365, 7
        %v1367 = vsub.s32 0, %v1366
        %v1368 = vrot.slane %v1363, %v1367
        %v1370 = vadd.f32 %v1355, %v1368
        %v1371 = vadd.f32 %v1356, %v1368
        %v1372 = vadd.f32 %v1357, %v1368
        %v1373 = vadd.f32 %v1358, %v1368
        %v1374 = vadd.f32 %v1359, %v1368
        %v1375 = vadd.f32 %v1360, %v1368
        %v1376 = vadd.f32 %v1361, %v1368
        %v1377 = vadd.f32 %v1362, %v1368
        %v1378 = vmax.f32 %v1370, 0.0
        %v1379 = vmax.f32 %v1371, 0.0
        %v1380 = vmax.f32 %v1372, 0.0
        %v1381 = vmax.f32 %v1373, 0.0
        %v1382 = vmax.f32 %v1374, 0.0
        %v1383 = vmax.f32 %v1375, 0.0
        %v1384 = vmax.f32 %v1376, 0.0
        %v1385 = vmax.f32 %v1377, 0.0
        %v1386 = vpack.c.bf16 %v1379, %v1378
        %v1387 = vpack.c.bf16 %v1381, %v1380
        %v1388 = vpack.c.bf16 %v1383, %v1382
        %v1389 = vpack.c.bf16 %v1385, %v1384
        %v1390 = vld [vmem:[%s3] sm:$0xf]
        %v1391 = vld [vmem:[%s3 + $0x4] sm:$0xf]
        %v1392 = vld [vmem:[%s3 + $0x8] sm:$0xf]
        %v1393 = vld [vmem:[%s3 + $0xc] sm:$0xf]
        %v1394 = vld [vmem:[%s4] sm:$0x1]
        %v1396 = vlaneseq
        %v1397 = vshrl.u32 %v1396, 7
        %v1398 = vsub.s32 0, %v1397
        %v1399 = vrot.slane %v1394, %v1398
        %v1405 = vunpack.c.l.b16 %v1390
        %v1406 = vunpack.c.l.b16 %v1391
        %v1407 = vunpack.c.l.b16 %v1392
        %v1408 = vunpack.c.l.b16 %v1393
        %v1409 = vpack.c.b16 %v1406, %v1405
        %v1410 = vpack.c.b16 %v1408, %v1407
        %v1414 = vsel %vm351, %v1386, 0
        %v1417 = vsel %vm351, %v1387, 0
        %v1420 = vsel %vm351, %v1388, 0
        %v1423 = vsel %vm351, %v1389, 0
        %1425 = vmatprep.subr.bf16.mxu0 0
        %1426 = vmatpush1.bf16.msra.mxu0 %v1409
        %1427 = vmatprep.subr.bf16.mxu0 0
        %1428 = vmatpush1.bf16.msra.mxu0 %v1410
        %1429 = vmatprep.subr.bf16.mxu0 0
        %1430 = vmatpush1.bf16.msra.mxu0 0
        %1431 = vmatprep.subr.bf16.mxu0 0
        %1432 = vmatpush1.bf16.msra.mxu0 0
        %1433 = vmatprep.subr.bf16.mxu0 0
        %1434 = vmatpush1.bf16.msra.mxu0 0
        %1435 = vmatprep.subr.bf16.mxu0 0
        %1436 = vmatpush1.bf16.msra.mxu0 0
        %1437 = vmatprep.subr.bf16.mxu0 0
        %1438 = vmatpush1.bf16.msra.mxu0 0
        %1439 = vmatprep.subr.bf16.mxu0 0
        %1440 = vmatpush1.bf16.msra.mxu0 0
        %1441 = vmatprep.subr.bf16.mxu0 0
        %1442 = vmatpush1.bf16.msra.mxu0 0
        %1443 = vmatprep.subr.bf16.mxu0 0
        %1444 = vmatpush1.bf16.msra.mxu0 0
        %1445 = vmatprep.subr.bf16.mxu0 0
        %1446 = vmatpush1.bf16.msra.mxu0 0
        %1447 = vmatprep.subr.bf16.mxu0 0
        %1448 = vmatpush1.bf16.msra.mxu0 0
        %1449 = vmatprep.subr.bf16.mxu0 0
        %1450 = vmatpush1.bf16.msra.mxu0 0
        %1451 = vmatprep.subr.bf16.mxu0 0
        %1452 = vmatpush1.bf16.msra.mxu0 0
        %1453 = vmatprep.subr.bf16.mxu0 0
        %1454 = vmatpush1.bf16.msra.mxu0 0
        %1455 = vmatprep.subr.bf16.mxu0 0
        %1456 = vmatpush1.bf16.msra.mxu0 0
        %1457 = vmatprep.mubr.bf16.mxu0 0
        %1458 = vmatmul.mubr.bf16.gmra.mrb[0].mxu0 %v1414
        %v1459 = vpop.f32.mrb[0].mxu0
        %v1460 = vadd.f32 %v1399, %v1459
        %v1461 = vpop.f32.mrb[0].mxu0
        %v1462 = vpop.f32.mrb[0].mxu0
        %v1463 = vadd.f32 %v1399, %v1462
        %v1464 = vpop.f32.mrb[0].mxu0
        %1465 = vmatprep.mubr.bf16.mxu0 0
        %1466 = vmatmul.mubr.bf16.gmra.mrb[0].mxu0 %v1417
        %v1467 = vpop.f32.mrb[0].mxu0
        %v1468 = vadd.f32 %v1399, %v1467
        %v1469 = vpop.f32.mrb[0].mxu0
        %v1470 = vpop.f32.mrb[0].mxu0
        %v1471 = vadd.f32 %v1399, %v1470
        %v1472 = vpop.f32.mrb[0].mxu0
        %1473 = vmatprep.mubr.bf16.mxu0 0
        %1474 = vmatmul.mubr.bf16.gmra.mrb[0].mxu0 %v1420
        %v1475 = vpop.f32.mrb[0].mxu0
        %v1476 = vadd.f32 %v1399, %v1475
        %v1477 = vpop.f32.mrb[0].mxu0
        %v1478 = vpop.f32.mrb[0].mxu0
        %v1479 = vadd.f32 %v1399, %v1478
        %v1480 = vpop.f32.mrb[0].mxu0
        %1481 = vmatprep.mubr.bf16.mxu0 0
        %1482 = vmatmul.mubr.bf16.gmra.mrb[0].mxu0 %v1423
        %v1483 = vpop.f32.mrb[0].mxu0
        %v1484 = vadd.f32 %v1399, %v1483
        %v1485 = vpop.f32.mrb[0].mxu0
        %v1486 = vpop.f32.mrb[0].mxu0
        %v1487 = vadd.f32 %v1399, %v1486
        %v1488 = vpop.f32.mrb[0].mxu0
        %1489 = vdwg.mxu0
        %v1490 = vld [vmem:[%s269] sm:$0xff]
        %v1491 = vld [vmem:[%s269 + $0x8] sm:$0xff]
        %v1492 = vld [vmem:[%s269 + $0x10] sm:$0xff]
        %v1493 = vld [vmem:[%s269 + $0x18] sm:$0xff]
        %v1494 = vld [vmem:[%s269 + $0x20] sm:$0xff]
        %v1495 = vld [vmem:[%s269 + $0x28] sm:$0xff]
        %v1496 = vld [vmem:[%s269 + $0x30] sm:$0xff]
        %v1497 = vld [vmem:[%s269 + $0x38] sm:$0xff]
        %v1498 = vadd.f32 %v1460, %v1490
        %v1499 = vadd.f32 %v1463, %v1491
        %v1500 = vadd.f32 %v1468, %v1492
        %v1501 = vadd.f32 %v1471, %v1493
        %v1502 = vadd.f32 %v1476, %v1494
        %v1503 = vadd.f32 %v1479, %v1495
        %v1504 = vadd.f32 %v1484, %v1496
        %v1505 = vadd.f32 %v1487, %v1497
        %v1506 = vmax.f32 %v1498, 0.0
        %v1507 = vmax.f32 %v1499, 0.0
        %v1508 = vmax.f32 %v1500, 0.0
        %v1509 = vmax.f32 %v1501, 0.0
        %v1510 = vmax.f32 %v1502, 0.0
        %v1511 = vmax.f32 %v1503, 0.0
        %v1512 = vmax.f32 %v1504, 0.0
        %v1513 = vmax.f32 %v1505, 0.0
        %1514 = vst [vmem:[%s259] sm:$0xff] %v1506
        %1515 = vst [vmem:[%s259 + $0x8] sm:$0xff] %v1507
        %1516 = vst [vmem:[%s259 + $0x10] sm:$0xff] %v1508
        %1517 = vst [vmem:[%s259 + $0x18] sm:$0xff] %v1509
        %1518 = vst [vmem:[%s259 + $0x20] sm:$0xff] %v1510
        %1519 = vst [vmem:[%s259 + $0x28] sm:$0xff] %v1511
        %1520 = vst [vmem:[%s259 + $0x30] sm:$0xff] %v1512
        %1521 = vst [vmem:[%s259 + $0x38] sm:$0xff] %v1513
        %s1522 = sand.u32 %s164, 1
        %s1523 = scalar_lea.sflag [#allocation3], %s1522
        %s1524 = sand.u32 %s164, 1
        %s1525 = smul.addr %s1524, 64
        %s1526 = scalar_lea.vmem [#allocation2], %s1525
        // Predicated region
        $region45: #{bottleneck_forward.5} parent=43 // pred_check
          %p1527 = pneg %p174
        $region46: #{bottleneck_forward.5} parent=43 // pred_check_branch
          %1529 = sbr.rel (%p1527) target = $region48
        $region47: #{bottleneck_forward.5} parent=43 // pred_region
          %s1531 = ssub.s32 1024, 1024
          %1532 = vsyncadd %s1523, %s1531
          %s1533 = smul.addr %s20, 8
          %s1534 = smul.addr %s1533, 128
          %s1535 = scalar_lea.hbm %s6, %s1534
          %s1536 = sshll.u32 %s1526, 4
          %s1537 = int_to_ptr.vmem [resolvable:$true] %s1536
          %1542 = dma.vmem_to_hbm [thread:$0]  %s1537, 1024, %s1535, %s1523, 128, 128, 8
        $region48: #{bottleneck_forward.5} parent=43 // pred_fallthru
          _
      $region44: #{bottleneck_forward.5} parent=5 // pred_fallthru
        _
      %p1543 = scmp.le.s32.totalorder 2, %s15
      // Predicated region
      $region49: #{bottleneck_forward.5} parent=5 // pred_check
        %p1544 = pneg %p1543
      $region50: #{bottleneck_forward.5} parent=5 // pred_check_branch
        %1546 = sbr.rel (%p1544) target = $region52
      $region51: #{bottleneck_forward.5} parent=5 // pred_region
        %s1547 = ssub.s32 %s15, 2
        // Predicated region
        $region53: #{bottleneck_forward.5} parent=51 // pred_check
          %p1548 = pneg %p180
        $region54: #{bottleneck_forward.5} parent=51 // pred_check_branch
          %1550 = sbr.rel (%p1548) target = $region56
        $region55: #{bottleneck_forward.5} parent=51 // pred_region
          %s1551 = sand.u32 %s165, 1
          %s1552 = scalar_lea.sflag [#allocation3], %s1551
          %s1553 = sand.u32 %s165, 1
          %s1554 = smul.addr %s1553, 64
          %s1555 = scalar_lea.vmem [#allocation2], %s1554
          %1556 = dma.done %s1552, 1024
        $region56: #{bottleneck_forward.5} parent=51 // pred_fallthru
          _
      $region52: #{bottleneck_forward.5} parent=5 // pred_fallthru
        _
    $region6: #{bottleneck_forward.5} parent=1 // loop_footer
      %s19 = sadd.s32 1, %s15
    $region7: #{bottleneck_forward.5} parent=1 // loop_footer_branch
      %14 = sbr.rel target = $region3
    $region8: #{bottleneck_forward.5} parent=1 // loop_exit
      _
    %1557 = vsyncpa [#allocation3], 1
    %s1558 = scalar_lea.sflag [#allocation3], 1
    %1559 = vsyncpa %s1558, 1

</llo_original>
